<compile_context>
chip_gen: v6e
topology: v6e:2x2x1
jax: 0.10.0
libtpu: 0.0.40
codegen_flags: <defaults>
</compile_context>

<pallas_src>
import functools

import jax
import jax.numpy as jnp
from jax.experimental import pallas as pl
from jax.experimental.pallas import tpu as pltpu


# ---------------------------------------------------------------------------
# Kernel
# ---------------------------------------------------------------------------
def _painn_update_kernel(state_ref, sv_ref, uvt_ref, w1t_ref, b1_ref,
                         w2t_ref, b2_ref, new_state_ref, new_sv_ref):
    tn, f = state_ref.shape

    state = state_ref[...]                      # (TN, F)   native dtype
    sv = sv_ref[...]                            # (3, TN, F) native dtype
    # Merge the xyz dim into the M (sublane) dim: free view (tn % 8 == 0).
    sv_flat = sv.reshape(3 * tn, f)

    # Fused U/V projection: one (3*TN, F) @ (F, 2F) MXU pass, f32 accumulate.
    uv = jnp.dot(sv_flat, uvt_ref[...], preferred_element_type=jnp.float32)
    uv3 = uv.reshape(3, tn, 2 * f)              # free split of the leading dim
    udot = uv3[:, :, :f]                        # (3, TN, F) f32
    vdot = uv3[:, :, f:]                        # (3, TN, F) f32

    # ||vdot||_2 over xyz (f32 elementwise; xyz is the leading "page" dim).
    vdot_norm = jnp.sqrt(jnp.sum(vdot * vdot, axis=0))          # (TN, F)

    # Gating MLP, first layer: single K=2F dot on the lane-concat input.
    stack = jnp.concatenate([state.astype(jnp.float32), vdot_norm],
                            axis=1).astype(w1t_ref.dtype)       # (TN, 2F)
    h = (jnp.dot(stack, w1t_ref[...], preferred_element_type=jnp.float32)
         + b1_ref[...])
    h = h * jax.nn.sigmoid(h)                   # SiLU in f32 (EUP path)
    h = h.astype(w2t_ref.dtype)

    # Second layer fused across the three gates: one (TN, F) @ (F, 3F) dot,
    # then cheap lane slices.
    a = (jnp.dot(h, w2t_ref[...], preferred_element_type=jnp.float32)
         + b2_ref[...])                         # (TN, 3F) f32
    a_vv = a[:, :f]
    a_sv = a[:, f:2 * f]
    a_ss = a[:, 2 * f:]

    dot_uv = jnp.sum(udot * vdot, axis=0)       # (TN, F) f32
    new_state_ref[...] = (state.astype(jnp.float32) + dot_uv * a_sv + a_ss
                          ).astype(new_state_ref.dtype)
    new_sv_ref[...] = (sv.astype(jnp.float32) + udot * a_vv[None, :, :]
                       ).astype(new_sv_ref.dtype)


# ---------------------------------------------------------------------------
# Tiling / VMEM sizing helpers
# ---------------------------------------------------------------------------
def _vmem_capacity_bytes():
    try:
        return int(pltpu.get_tpu_info().vmem_capacity_bytes)
    except Exception:
        return 64 * 1024 * 1024   # conservative (v7x per-TC physical VMEM)


def _estimate_vmem_bytes(tn, f, io_itemsize, w_itemsize):
    io = 2 * 2 * (tn * f + 3 * tn * f) * io_itemsize   # in+out, double-buffered
    temps = 14 * tn * f * 4                            # f32 intermediates
    weights = 2 * (7 * f * f + 5 * f) * w_itemsize     # uvt,w1t,w2t,biases (x2)
    return io + temps + weights


def _choose_tile(n, f, io_itemsize, w_itemsize, requested):
    if requested is not None:
        tn = max(8, (int(requested) // 8) * 8)
    else:
        # Aim for >=4 grid steps (v7x has 2 TCs; keep the pipeline full) while
        # keeping per-step tiles large enough to amortize ~0.35us step cost.
        tn = 1024
        while tn > 8 and n < 4 * tn:
            tn //= 2
        tn = max(tn, 8)
    budget = int(_vmem_capacity_bytes() * 0.6)
    while tn > 8 and _estimate_vmem_bytes(tn, f, io_itemsize, w_itemsize) > budget:
        tn //= 2
    return tn


# ---------------------------------------------------------------------------
# Wrappers
# ---------------------------------------------------------------------------
def painn_update_3nf(state, state_vec_3nf, params, *, tn=None):
    """Transpose-free core.  state: (N, F); state_vec_3nf: (3, N, F).

    Keep the (3, N, F) layout persistent across PaiNN layers and call this
    directly — it avoids the HBM round-trip transposes of `painn_update`.
    """
    n, f = state.shape
    assert state_vec_3nf.shape == (3, n, f)

    u, v = params['U'], params['V']
    w1, b1 = params['W1'], params['b1']
    w2, b2 = params['W2'], params['b2']

    # One-time (under jit) weight packing: fused + pre-transposed so the
    # kernel body has no transposes and only 3 MXU dots.
    uvt = jnp.concatenate([u.T, v.T], axis=1)       # (F, 2F)
    w1t = w1.T                                      # (2F, F)
    b1_2d = b1.reshape(1, f)
    w2t = w2.T                                      # (F, 3F)
    b2_2d = b2.reshape(1, 3 * f)

    io_isz = jnp.dtype(state.dtype).itemsize
    w_isz = jnp.dtype(u.dtype).itemsize
    tile = _choose_tile(n, f, io_isz, w_isz, tn)

    # Pad the row dim to a multiple of the tile (zero rows are harmless).
    n_pad = pl.cdiv(n, tile) * tile
    if n_pad != n:
        pad = n_pad - n
        state_p = jnp.pad(state, ((0, pad), (0, 0)))
        sv_p = jnp.pad(state_vec_3nf, ((0, 0), (0, pad), (0, 0)))
    else:
        state_p, sv_p = state, state_vec_3nf

    est = _estimate_vmem_bytes(tile, f, io_isz, w_isz)
    vmem_limit = int(min(_vmem_capacity_bytes() * 0.75,
                         max(32 * 1024 * 1024, 4 * est)))

    const = lambda i: (0, 0)
    new_state, new_sv = pl.pallas_call(
        _painn_update_kernel,
        out_shape=(
            jax.ShapeDtypeStruct((n_pad, f), state.dtype),
            jax.ShapeDtypeStruct((3, n_pad, f), state_vec_3nf.dtype),
        ),
        grid=(n_pad // tile,),
        in_specs=[
            pl.BlockSpec((tile, f), lambda i: (i, 0)),        # state tile
            pl.BlockSpec((3, tile, f), lambda i: (0, i, 0)),  # state_vec tile
            pl.BlockSpec((f, 2 * f), const),                  # [U^T | V^T]
            pl.BlockSpec((2 * f, f), const),                  # W1^T
            pl.BlockSpec((1, f), const),                      # b1
            pl.BlockSpec((f, 3 * f), const),                  # W2^T (all gates)
            pl.BlockSpec((1, 3 * f), const),                  # b2 (all gates)
        ],
        out_specs=(
            pl.BlockSpec((tile, f), lambda i: (i, 0)),
            pl.BlockSpec((3, tile, f), lambda i: (0, i, 0)),
        ),
        compiler_params=pltpu.CompilerParams(
            dimension_semantics=("parallel",),
            vmem_limit_bytes=vmem_limit),
    )(state_p, sv_p, uvt, w1t, b1_2d, w2t, b2_2d)

    if n_pad != n:
        new_state = new_state[:n]
        new_sv = new_sv[:, :n]
    return new_state, new_sv


def painn_update(state, state_vec, params, *, tn=None):
    """API-compatible wrapper.  state: (N, F); state_vec: (N, F, 3).

    NOTE: the two transposes below each read+write the full vector state in
    HBM.  In a multi-layer PaiNN stack, keep the (3, N, F) layout persistent
    and call painn_update_3nf directly to avoid them.
    """
    sv = jnp.transpose(state_vec, (2, 0, 1))                 # (3, N, F)
    new_state, new_sv = painn_update_3nf(state, sv, params, tn=tn)
    return new_state, jnp.transpose(new_sv, (1, 2, 0))       # back to (N, F, 3)


def painn_update_ref(state, state_vec, params):
    """Pure-JAX reference (mirrors the PyTorch forward)."""
    f = state.shape[1]
    u, v, w1, b1, w2, b2 = (params['U'], params['V'], params['W1'],
                            params['b1'], params['W2'], params['b2'])
    udot = jnp.einsum('ij,njc->nic', u, state_vec)
    vdot = jnp.einsum('ij,njc->nic', v, state_vec)
    vdot_norm = jnp.linalg.norm(vdot, axis=2)
    stack = jnp.concatenate([state, vdot_norm], axis=1)
    h = stack @ w1.T + b1
    h = h * jax.nn.sigmoid(h)
    out = h @ w2.T + b2
    a_vv, a_sv, a_ss = out[:, :f], out[:, f:2 * f], out[:, 2 * f:]
    delta_vi = udot * a_vv[:, :, None]
    dot = jnp.sum(udot * vdot, axis=2)
    delta_si = dot * a_sv + a_ss
    return state + delta_si, state_vec + delta_vi


# ---------------------------------------------------------------------------
# Demo / self-test
# ---------------------------------------------------------------------------
if __name__ == "__main__":
    state_dim = 32   # F (matches the PyTorch module's state_dim)
    n_nodes = 512    # N

    key = jax.random.PRNGKey(0)
    ks = jax.random.split(key, 8)

    params = {
        'U': jax.random.normal(ks[0], (state_dim, state_dim), jnp.float32),
        'V': jax.random.normal(ks[1], (state_dim, state_dim), jnp.float32),
        'W1': jax.random.normal(ks[2], (state_dim, 2 * state_dim), jnp.float32) * 0.1,
        'b1': jax.random.normal(ks[3], (state_dim,), jnp.float32) * 0.1,
        'W2': jax.random.normal(ks[4], (3 * state_dim, state_dim), jnp.float32) * 0.1,
        'b2': jax.random.normal(ks[5], (3 * state_dim,), jnp.float32) * 0.1,
    }

    state = jax.random.normal(ks[6], (n_nodes, state_dim), jnp.float32)
    state_vec = jax.random.normal(ks[7], (n_nodes, state_dim, 3), jnp.float32)

    ref_state, ref_state_vec = painn_update_ref(state, state_vec, params)

    # (1) f32, persistent (3, N, F) layout — the preferred entry point.
    sv_3nf = jnp.transpose(state_vec, (2, 0, 1))
    fn_3nf = jax.jit(functools.partial(painn_update_3nf, params=params))
    out_state, out_sv = fn_3nf(state, sv_3nf)
    jax.block_until_ready((out_state, out_sv))
    assert jnp.allclose(out_state, ref_state, atol=1e-4, rtol=1e-4)
    assert jnp.allclose(jnp.transpose(out_sv, (1, 2, 0)), ref_state_vec,
                        atol=1e-4, rtol=1e-4)

    # (2) API-compatible (N, F, 3) wrapper.
    out_s2, out_v2 = jax.jit(
        functools.partial(painn_update, params=params))(state, state_vec)
    jax.block_until_ready((out_s2, out_v2))
    assert jnp.allclose(out_s2, ref_state, atol=1e-4, rtol=1e-4)
    assert jnp.allclose(out_v2, ref_state_vec, atol=1e-4, rtol=1e-4)

    # (3) Ragged N (exercises the zero-padding path).
    n_r = 500
    out_sr, out_vr = fn_3nf(state[:n_r], sv_3nf[:, :n_r])
    jax.block_until_ready((out_sr, out_vr))
    assert jnp.allclose(out_sr, ref_state[:n_r], atol=1e-4, rtol=1e-4)
    assert jnp.allclose(out_vr,
                        jnp.transpose(ref_state_vec[:n_r], (2, 0, 1)),
                        atol=1e-4, rtol=1e-4)

    # (4) bf16 activations + weights (halves HBM bytes; f32 accumulation and
    # elementwise math inside the kernel).  Loose, scale-relative tolerance.
    params_bf = {k: p.astype(jnp.bfloat16) for k, p in params.items()}
    fn_bf = jax.jit(functools.partial(painn_update_3nf, params=params_bf))
    bf_s, bf_v = fn_bf(state.astype(jnp.bfloat16), sv_3nf.astype(jnp.bfloat16))
    jax.block_until_ready((bf_s, bf_v))
    scale_s = float(jnp.max(jnp.abs(ref_state))) + 1.0
    scale_v = float(jnp.max(jnp.abs(ref_state_vec))) + 1.0
    assert bool(jnp.all(jnp.isfinite(bf_s.astype(jnp.float32))))
    assert bool(jnp.all(jnp.isfinite(bf_v.astype(jnp.float32))))
    assert float(jnp.max(jnp.abs(bf_s.astype(jnp.float32) - ref_state))) < 0.1 * scale_s
    assert float(jnp.max(jnp.abs(
        jnp.transpose(bf_v.astype(jnp.float32), (1, 2, 0)) - ref_state_vec
    ))) < 0.1 * scale_v

    print("KERNEL_OK")
</pallas_src>

<mosaic_0001>
module attributes {stable_mosaic.version = 11 : i64} {
  func.func @_painn_update_kernel(%arg0: i32, %arg1: memref<128x32xf32, #tpu.memory_space<vmem>>, %arg2: memref<3x128x32xf32, #tpu.memory_space<vmem>>, %arg3: memref<32x64xf32, #tpu.memory_space<vmem>>, %arg4: memref<64x32xf32, #tpu.memory_space<vmem>>, %arg5: memref<1x32xf32, #tpu.memory_space<vmem>>, %arg6: memref<32x96xf32, #tpu.memory_space<vmem>>, %arg7: memref<1x96xf32, #tpu.memory_space<vmem>>, %arg8: memref<128x32xf32, #tpu.memory_space<vmem>>, %arg9: memref<3x128x32xf32, #tpu.memory_space<vmem>>) attributes {dimension_semantics = [#tpu.dimension_semantics<parallel>], iteration_bounds = array<i64: 4>, scalar_prefetch = 0 : i64, scratch_operands = 0 : i64, tpu.core_type = #tpu.core_type<tc>, window_params = [{transform_indices = @transform_0, window_bounds = array<i64: 128, 32>}, {transform_indices = @transform_1, window_bounds = array<i64: 3, 128, 32>}, {pipeline_mode = #tpu.pipeline_mode<synchronous>, transform_indices = @transform_2, window_bounds = array<i64: 32, 64>}, {pipeline_mode = #tpu.pipeline_mode<synchronous>, transform_indices = @transform_3, window_bounds = array<i64: 64, 32>}, {pipeline_mode = #tpu.pipeline_mode<synchronous>, transform_indices = @transform_4, window_bounds = array<i64: 1, 32>}, {pipeline_mode = #tpu.pipeline_mode<synchronous>, transform_indices = @transform_5, window_bounds = array<i64: 32, 96>}, {pipeline_mode = #tpu.pipeline_mode<synchronous>, transform_indices = @transform_6, window_bounds = array<i64: 1, 96>}, {transform_indices = @transform_7, window_bounds = array<i64: 128, 32>}, {transform_indices = @transform_8, window_bounds = array<i64: 3, 128, 32>}]} {
    %c0 = arith.constant 0 : index
    %c0_0 = arith.constant 0 : index
    %0 = vector.load %arg1[%c0, %c0_0] : memref<128x32xf32, #tpu.memory_space<vmem>>, vector<128x32xf32>
    %c0_1 = arith.constant 0 : index
    %c0_2 = arith.constant 0 : index
    %c0_3 = arith.constant 0 : index
    %1 = vector.load %arg2[%c0_1, %c0_2, %c0_3] : memref<3x128x32xf32, #tpu.memory_space<vmem>>, vector<3x128x32xf32>
    %2 = vector.shape_cast %1 : vector<3x128x32xf32> to vector<384x32xf32>
    %c0_4 = arith.constant 0 : index
    %c0_5 = arith.constant 0 : index
    %3 = vector.load %arg3[%c0_4, %c0_5] : memref<32x64xf32, #tpu.memory_space<vmem>>, vector<32x64xf32>
    %cst = arith.constant dense<0.000000e+00> : vector<384x64xf32>
    %4 = tpu.matmul %2, %3, %cst {dimension_numbers = #tpu.dot_dimension_numbers<[1], [0], [0], [1], [0, 0, 1, 1], [], []>} : vector<384x32xf32>, vector<32x64xf32>, vector<384x64xf32> -> vector<384x64xf32>
    %5 = vector.shape_cast %4 : vector<384x64xf32> to vector<3x128x64xf32>
    %6 = vector.extract_strided_slice %5 {offsets = [0, 0, 0], sizes = [3, 128, 32], strides = [1, 1, 1]} : vector<3x128x64xf32> to vector<3x128x32xf32>
    %7 = vector.extract_strided_slice %5 {offsets = [0, 0, 32], sizes = [3, 128, 32], strides = [1, 1, 1]} : vector<3x128x64xf32> to vector<3x128x32xf32>
    %8 = arith.mulf %7, %7 : vector<3x128x32xf32>
    %cst_6 = arith.constant dense<0.000000e+00> : vector<128x32xf32>
    %9 = vector.multi_reduction <add>, %8, %cst_6 [0] : vector<3x128x32xf32> to vector<128x32xf32>
    %10 = math.sqrt %9 : vector<128x32xf32>
    %11 = tpu.concatenate %0, %10 in 1 : vector<128x32xf32>, vector<128x32xf32> -> vector<128x64xf32>
    %c0_7 = arith.constant 0 : index
    %c0_8 = arith.constant 0 : index
    %12 = vector.load %arg4[%c0_7, %c0_8] : memref<64x32xf32, #tpu.memory_space<vmem>>, vector<64x32xf32>
    %cst_9 = arith.constant dense<0.000000e+00> : vector<128x32xf32>
    %13 = tpu.matmul %11, %12, %cst_9 {dimension_numbers = #tpu.dot_dimension_numbers<[1], [0], [0], [1], [0, 0, 1, 1], [], []>} : vector<128x64xf32>, vector<64x32xf32>, vector<128x32xf32> -> vector<128x32xf32>
    %c0_10 = arith.constant 0 : index
    %c0_11 = arith.constant 0 : index
    %14 = vector.load %arg5[%c0_10, %c0_11] : memref<1x32xf32, #tpu.memory_space<vmem>>, vector<1x32xf32>
    %15 = vector.broadcast %14 : vector<1x32xf32> to vector<128x32xf32>
    %16 = arith.addf %13, %15 : vector<128x32xf32>
    %17 = arith.negf %16 : vector<128x32xf32>
    %18 = math.exp %17 : vector<128x32xf32>
    %cst_12 = arith.constant 1.000000e+00 : f32
    %19 = vector.broadcast %cst_12 : f32 to vector<128x32xf32>
    %20 = arith.addf %19, %18 : vector<128x32xf32>
    %21 = arith.divf %19, %20 : vector<128x32xf32>
    %22 = arith.mulf %16, %21 : vector<128x32xf32>
    %c0_13 = arith.constant 0 : index
    %c0_14 = arith.constant 0 : index
    %23 = vector.load %arg6[%c0_13, %c0_14] : memref<32x96xf32, #tpu.memory_space<vmem>>, vector<32x96xf32>
    %cst_15 = arith.constant dense<0.000000e+00> : vector<128x96xf32>
    %24 = tpu.matmul %22, %23, %cst_15 {dimension_numbers = #tpu.dot_dimension_numbers<[1], [0], [0], [1], [0, 0, 1, 1], [], []>} : vector<128x32xf32>, vector<32x96xf32>, vector<128x96xf32> -> vector<128x96xf32>
    %c0_16 = arith.constant 0 : index
    %c0_17 = arith.constant 0 : index
    %25 = vector.load %arg7[%c0_16, %c0_17] : memref<1x96xf32, #tpu.memory_space<vmem>>, vector<1x96xf32>
    %26 = vector.broadcast %25 : vector<1x96xf32> to vector<128x96xf32>
    %27 = arith.addf %24, %26 : vector<128x96xf32>
    %28 = vector.extract_strided_slice %27 {offsets = [0, 0], sizes = [128, 32], strides = [1, 1]} : vector<128x96xf32> to vector<128x32xf32>
    %29 = vector.extract_strided_slice %27 {offsets = [0, 32], sizes = [128, 32], strides = [1, 1]} : vector<128x96xf32> to vector<128x32xf32>
    %30 = vector.extract_strided_slice %27 {offsets = [0, 64], sizes = [128, 32], strides = [1, 1]} : vector<128x96xf32> to vector<128x32xf32>
    %31 = arith.mulf %6, %7 : vector<3x128x32xf32>
    %cst_18 = arith.constant dense<0.000000e+00> : vector<128x32xf32>
    %32 = vector.multi_reduction <add>, %31, %cst_18 [0] : vector<3x128x32xf32> to vector<128x32xf32>
    %33 = arith.mulf %32, %29 : vector<128x32xf32>
    %34 = arith.addf %0, %33 : vector<128x32xf32>
    %35 = arith.addf %34, %30 : vector<128x32xf32>
    %c0_19 = arith.constant 0 : index
    %c0_20 = arith.constant 0 : index
    %36 = vector.load %arg8[%c0_19, %c0_20] : memref<128x32xf32, #tpu.memory_space<vmem>>, vector<128x32xf32>
    tpu.vector_store %arg8[%c0_19, %c0_20], %35 {strides = array<i32>} : memref<128x32xf32, #tpu.memory_space<vmem>>, vector<128x32xf32>,
    %37 = vector.shape_cast %28 : vector<128x32xf32> to vector<1x128x32xf32>
    %38 = vector.broadcast %37 : vector<1x128x32xf32> to vector<3x128x32xf32>
    %39 = arith.mulf %6, %38 : vector<3x128x32xf32>
    %40 = arith.addf %1, %39 : vector<3x128x32xf32>
    %c0_21 = arith.constant 0 : index
    %c0_22 = arith.constant 0 : index
    %c0_23 = arith.constant 0 : index
    %41 = vector.load %arg9[%c0_21, %c0_22, %c0_23] : memref<3x128x32xf32, #tpu.memory_space<vmem>>, vector<3x128x32xf32>
    tpu.vector_store %arg9[%c0_21, %c0_22, %c0_23], %40 {strides = array<i32>} : memref<3x128x32xf32, #tpu.memory_space<vmem>>, vector<3x128x32xf32>,
    return
  }
  func.func @transform_0(%arg0: i32) -> (i32, i32) {
    %c0_i32 = arith.constant 0 : i32
    %c0_i32_0 = arith.constant 0 : i32
    return %arg0, %c0_i32 : i32, i32
  }
  func.func @transform_1(%arg0: i32) -> (i32, i32, i32) {
    %c0_i32 = arith.constant 0 : i32
    %c0_i32_0 = arith.constant 0 : i32
    %c0_i32_1 = arith.constant 0 : i32
    return %c0_i32, %arg0, %c0_i32_0 : i32, i32, i32
  }
  func.func @transform_2(%arg0: i32) -> (i32, i32) {
    %c0_i32 = arith.constant 0 : i32
    %c0_i32_0 = arith.constant 0 : i32
    %c0_i32_1 = arith.constant 0 : i32
    return %c0_i32, %c0_i32_0 : i32, i32
  }
  func.func @transform_3(%arg0: i32) -> (i32, i32) {
    %c0_i32 = arith.constant 0 : i32
    %c0_i32_0 = arith.constant 0 : i32
    %c0_i32_1 = arith.constant 0 : i32
    return %c0_i32, %c0_i32_0 : i32, i32
  }
  func.func @transform_4(%arg0: i32) -> (i32, i32) {
    %c0_i32 = arith.constant 0 : i32
    %c0_i32_0 = arith.constant 0 : i32
    %c0_i32_1 = arith.constant 0 : i32
    return %c0_i32, %c0_i32_0 : i32, i32
  }
  func.func @transform_5(%arg0: i32) -> (i32, i32) {
    %c0_i32 = arith.constant 0 : i32
    %c0_i32_0 = arith.constant 0 : i32
    %c0_i32_1 = arith.constant 0 : i32
    return %c0_i32, %c0_i32_0 : i32, i32
  }
  func.func @transform_6(%arg0: i32) -> (i32, i32) {
    %c0_i32 = arith.constant 0 : i32
    %c0_i32_0 = arith.constant 0 : i32
    %c0_i32_1 = arith.constant 0 : i32
    return %c0_i32, %c0_i32_0 : i32, i32
  }
  func.func @transform_7(%arg0: i32) -> (i32, i32) {
    %c0_i32 = arith.constant 0 : i32
    %c0_i32_0 = arith.constant 0 : i32
    return %arg0, %c0_i32 : i32, i32
  }
  func.func @transform_8(%arg0: i32) -> (i32, i32, i32) {
    %c0_i32 = arith.constant 0 : i32
    %c0_i32_0 = arith.constant 0 : i32
    %c0_i32_1 = arith.constant 0 : i32
    return %c0_i32, %arg0, %c0_i32_0 : i32, i32, i32
  }
}

</mosaic_0001>

<llo_original>
// kernel: painn_update_3nf.1
$region0: #{painn_update_3nf.1}
  #allocation0 [shape = 'u32[]', space=smem, size = 0x4, offset = 0x4, fixed_abs, tag = 'smem constant byte address 0x4 - core index']
  #allocation1 [shape = 'u32[144,128]{1,0:T(1,128)}', space=vmem, size = 0x12000, scoped, tag = 'internal scratch']
  %s0 = inlined_call_operand.vmem [shape: f32[512,32], index: 0, kind: input, shape index: {}]
  %s1 = inlined_call_operand.vmem [shape: f32[3,512,32], index: 1, kind: input, shape index: {}]
  %s2 = inlined_call_operand.vmem [shape: f32[32,64], index: 2, kind: input, shape index: {}]
  %s3 = inlined_call_operand.vmem [shape: f32[64,32], index: 3, kind: input, shape index: {}]
  %s4 = inlined_call_operand.vmem [shape: f32[1,32], index: 4, kind: input, shape index: {}]
  %s5 = inlined_call_operand.vmem [shape: f32[32,96], index: 5, kind: input, shape index: {}]
  %s6 = inlined_call_operand.vmem [shape: f32[1,96], index: 6, kind: input, shape index: {}]
  %s7 = inlined_call_operand.vmem [shape: f32[512,32], index: 7, kind: output, shape index: {0}]
  %s8 = inlined_call_operand.vmem [shape: f32[3,512,32], index: 8, kind: output, shape index: {1}]
  %9 = xla_tuple %s7, %s8
  %s10 = sld [smem:[#allocation0]]
  $region141: #{painn_update_3nf.1} parent=0
    _
  %s12 = ssub.s32 1, %s10
  %s13 = scalar_select 0, %s12, %s10
  $region1: #{painn_update_3nf.1} parent=0
    #allocation2 [shape = 'u8[393216]{0}', space=vmem, size = 0x60000, scoped, tag = 'input window, operand 1']
    #allocation3 [shape = 'u8[393216]{0}', space=vmem, size = 0x60000, scoped, tag = 'output window, operand 1']
    loop: start=0, step=1, limit=6
    $region2: #{painn_update_3nf.1} parent=1 // loop_pre_header
      _
    $region3: #{painn_update_3nf.1} parent=1 // loop_header
      %s15 = sphi 0, %s19
      %p16 = scmp.ge.s32.totalorder %s15, 6
      %s25 = sphi 0, %s27
      %s28 = sphi 0, %s25
      %s29 = sphi 0, %s28
      %s45 = sphi 0, %s29
      %s51 = sphi 0, %s53
      %s54 = sphi 0, %s51
      %s55 = sphi 0, %s54
      %s71 = sphi 0, %s55
      %s75 = sphi 0, %s75
      %s77 = sphi 0, %s75
      %s78 = sphi 0, %s77
      %s92 = sphi 0, %s78
      %s96 = sphi 0, %s96
      %s98 = sphi 0, %s96
      %s99 = sphi 0, %s98
      %s113 = sphi 0, %s99
      %s117 = sphi 0, %s117
      %s119 = sphi 0, %s117
      %s120 = sphi 0, %s119
      %s134 = sphi 0, %s120
      %s138 = sphi 0, %s138
      %s140 = sphi 0, %s138
      %s141 = sphi 0, %s140
      %s155 = sphi 0, %s141
      %s159 = sphi 0, %s159
      %s161 = sphi 0, %s159
      %s162 = sphi 0, %s161
      %s176 = sphi 0, %s162
      %s182 = sphi 0, %s184
      %s185 = sphi 0, %s182
      %s186 = sphi 0, %s185
      %s202 = sphi 0, %s186
      %s208 = sphi 0, %s210
      %s211 = sphi 0, %s208
      %s212 = sphi 0, %s211
      %s228 = sphi 0, %s212
    $region4: #{painn_update_3nf.1} parent=1 // loop_header_branch
      %18 = sbr.rel (%p16) target = $region8
    $region5: #{painn_update_3nf.1} parent=1 // loop_body
      %s20 = ssub.s32 %s15, 1
      %s21 = ssub.s32 %s15, 2
      %s22 = sadd.s32 %s15, 1
      %s23 = ssub.s32 %s15, %s22
      %p24 = scmp.eq.s32.totalorder %s23, 0
      %s26 = sadd.s32 %s25, 1
      %s27 = scalar_select %p24, %s25, %s26
      %p30 = pneg %p24
      %p31 = scmp.eq.s32.totalorder %s15, 3
      %p32 = por %p30, %p31
      %p33 = scmp.ne.s32.totalorder %s25, %s28
      %p34 = scmp.eq.s32.totalorder %s15, 0
      %p35 = por %p33, %p34
      %p36 = scmp.ne.s32.totalorder %s25, %s28
      %p37 = scmp.eq.s32.totalorder %s20, 3
      %p38 = por %p36, %p37
      %p39 = scmp.ne.s32.totalorder %s28, %s29
      %p40 = scmp.eq.s32.totalorder %s20, 0
      %p41 = por %p39, %p40
      %p42 = scmp.ne.s32.totalorder %s28, %s29
      %p43 = scmp.eq.s32.totalorder %s21, 3
      %p44 = por %p42, %p43
      %p46 = scmp.ne.s32.totalorder %s29, %s45
      %p47 = scmp.eq.s32.totalorder %s21, 0
      %p48 = por %p46, %p47
      %s49 = ssub.s32 %s15, %s22
      %p50 = scmp.eq.s32.totalorder %s49, 0
      %s52 = sadd.s32 %s51, 1
      %s53 = scalar_select %p50, %s51, %s52
      %p56 = pneg %p50
      %p57 = scmp.eq.s32.totalorder %s15, 3
      %p58 = por %p56, %p57
      %p59 = scmp.ne.s32.totalorder %s51, %s54
      %p60 = scmp.eq.s32.totalorder %s15, 0
      %p61 = por %p59, %p60
      %p62 = scmp.ne.s32.totalorder %s51, %s54
      %p63 = scmp.eq.s32.totalorder %s20, 3
      %p64 = por %p62, %p63
      %p65 = scmp.ne.s32.totalorder %s54, %s55
      %p66 = scmp.eq.s32.totalorder %s20, 0
      %p67 = por %p65, %p66
      %p68 = scmp.ne.s32.totalorder %s54, %s55
      %p69 = scmp.eq.s32.totalorder %s21, 3
      %p70 = por %p68, %p69
      %p72 = scmp.ne.s32.totalorder %s55, %s71
      %p73 = scmp.eq.s32.totalorder %s21, 0
      %p74 = por %p72, %p73
      %s76 = sadd.s32 %s75, 1
      %p79 = scmp.eq.s32.totalorder %s15, 3
      %p80 = scmp.ne.s32.totalorder %s75, %s77
      %p81 = scmp.eq.s32.totalorder %s15, 0
      %p82 = por %p80, %p81
      %p83 = scmp.ne.s32.totalorder %s75, %s77
      %p84 = scmp.eq.s32.totalorder %s20, 3
      %p85 = por %p83, %p84
      %p86 = scmp.ne.s32.totalorder %s77, %s78
      %p87 = scmp.eq.s32.totalorder %s20, 0
      %p88 = por %p86, %p87
      %p89 = scmp.ne.s32.totalorder %s77, %s78
      %p90 = scmp.eq.s32.totalorder %s21, 3
      %p91 = por %p89, %p90
      %p93 = scmp.ne.s32.totalorder %s78, %s92
      %p94 = scmp.eq.s32.totalorder %s21, 0
      %p95 = por %p93, %p94
      %s97 = sadd.s32 %s96, 1
      %p100 = scmp.eq.s32.totalorder %s15, 3
      %p101 = scmp.ne.s32.totalorder %s96, %s98
      %p102 = scmp.eq.s32.totalorder %s15, 0
      %p103 = por %p101, %p102
      %p104 = scmp.ne.s32.totalorder %s96, %s98
      %p105 = scmp.eq.s32.totalorder %s20, 3
      %p106 = por %p104, %p105
      %p107 = scmp.ne.s32.totalorder %s98, %s99
      %p108 = scmp.eq.s32.totalorder %s20, 0
      %p109 = por %p107, %p108
      %p110 = scmp.ne.s32.totalorder %s98, %s99
      %p111 = scmp.eq.s32.totalorder %s21, 3
      %p112 = por %p110, %p111
      %p114 = scmp.ne.s32.totalorder %s99, %s113
      %p115 = scmp.eq.s32.totalorder %s21, 0
      %p116 = por %p114, %p115
      %s118 = sadd.s32 %s117, 1
      %p121 = scmp.eq.s32.totalorder %s15, 3
      %p122 = scmp.ne.s32.totalorder %s117, %s119
      %p123 = scmp.eq.s32.totalorder %s15, 0
      %p124 = por %p122, %p123
      %p125 = scmp.ne.s32.totalorder %s117, %s119
      %p126 = scmp.eq.s32.totalorder %s20, 3
      %p127 = por %p125, %p126
      %p128 = scmp.ne.s32.totalorder %s119, %s120
      %p129 = scmp.eq.s32.totalorder %s20, 0
      %p130 = por %p128, %p129
      %p131 = scmp.ne.s32.totalorder %s119, %s120
      %p132 = scmp.eq.s32.totalorder %s21, 3
      %p133 = por %p131, %p132
      %p135 = scmp.ne.s32.totalorder %s120, %s134
      %p136 = scmp.eq.s32.totalorder %s21, 0
      %p137 = por %p135, %p136
      %s139 = sadd.s32 %s138, 1
      %p142 = scmp.eq.s32.totalorder %s15, 3
      %p143 = scmp.ne.s32.totalorder %s138, %s140
      %p144 = scmp.eq.s32.totalorder %s15, 0
      %p145 = por %p143, %p144
      %p146 = scmp.ne.s32.totalorder %s138, %s140
      %p147 = scmp.eq.s32.totalorder %s20, 3
      %p148 = por %p146, %p147
      %p149 = scmp.ne.s32.totalorder %s140, %s141
      %p150 = scmp.eq.s32.totalorder %s20, 0
      %p151 = por %p149, %p150
      %p152 = scmp.ne.s32.totalorder %s140, %s141
      %p153 = scmp.eq.s32.totalorder %s21, 3
      %p154 = por %p152, %p153
      %p156 = scmp.ne.s32.totalorder %s141, %s155
      %p157 = scmp.eq.s32.totalorder %s21, 0
      %p158 = por %p156, %p157
      %s160 = sadd.s32 %s159, 1
      %p163 = scmp.eq.s32.totalorder %s15, 3
      %p164 = scmp.ne.s32.totalorder %s159, %s161
      %p165 = scmp.eq.s32.totalorder %s15, 0
      %p166 = por %p164, %p165
      %p167 = scmp.ne.s32.totalorder %s159, %s161
      %p168 = scmp.eq.s32.totalorder %s20, 3
      %p169 = por %p167, %p168
      %p170 = scmp.ne.s32.totalorder %s161, %s162
      %p171 = scmp.eq.s32.totalorder %s20, 0
      %p172 = por %p170, %p171
      %p173 = scmp.ne.s32.totalorder %s161, %s162
      %p174 = scmp.eq.s32.totalorder %s21, 3
      %p175 = por %p173, %p174
      %p177 = scmp.ne.s32.totalorder %s162, %s176
      %p178 = scmp.eq.s32.totalorder %s21, 0
      %p179 = por %p177, %p178
      %s180 = ssub.s32 %s15, %s22
      %p181 = scmp.eq.s32.totalorder %s180, 0
      %s183 = sadd.s32 %s182, 1
      %s184 = scalar_select %p181, %s182, %s183
      %p187 = pneg %p181
      %p188 = scmp.eq.s32.totalorder %s15, 3
      %p189 = por %p187, %p188
      %p190 = scmp.ne.s32.totalorder %s182, %s185
      %p191 = scmp.eq.s32.totalorder %s15, 0
      %p192 = por %p190, %p191
      %p193 = scmp.ne.s32.totalorder %s182, %s185
      %p194 = scmp.eq.s32.totalorder %s20, 3
      %p195 = por %p193, %p194
      %p196 = scmp.ne.s32.totalorder %s185, %s186
      %p197 = scmp.eq.s32.totalorder %s20, 0
      %p198 = por %p196, %p197
      %p199 = scmp.ne.s32.totalorder %s185, %s186
      %p200 = scmp.eq.s32.totalorder %s21, 3
      %p201 = por %p199, %p200
      %p203 = scmp.ne.s32.totalorder %s186, %s202
      %p204 = scmp.eq.s32.totalorder %s21, 0
      %p205 = por %p203, %p204
      %s206 = ssub.s32 %s15, %s22
      %p207 = scmp.eq.s32.totalorder %s206, 0
      %s209 = sadd.s32 %s208, 1
      %s210 = scalar_select %p207, %s208, %s209
      %p213 = pneg %p207
      %p214 = scmp.eq.s32.totalorder %s15, 3
      %p215 = por %p213, %p214
      %p216 = scmp.ne.s32.totalorder %s208, %s211
      %p217 = scmp.eq.s32.totalorder %s15, 0
      %p218 = por %p216, %p217
      %p219 = scmp.ne.s32.totalorder %s208, %s211
      %p220 = scmp.eq.s32.totalorder %s20, 3
      %p221 = por %p219, %p220
      %p222 = scmp.ne.s32.totalorder %s211, %s212
      %p223 = scmp.eq.s32.totalorder %s20, 0
      %p224 = por %p222, %p223
      %p225 = scmp.ne.s32.totalorder %s211, %s212
      %p226 = scmp.eq.s32.totalorder %s21, 3
      %p227 = por %p225, %p226
      %p229 = scmp.ne.s32.totalorder %s212, %s228
      %p230 = scmp.eq.s32.totalorder %s21, 0
      %p231 = por %p229, %p230
      %p232 = scmp.le.s32.totalorder 1, %s15
      %p233 = scmp.lt.s32.totalorder %s15, 5
      %p234 = pnand %p232, %p233
      %p235 = pneg %p234
      // Predicated region
      $region9: #{painn_update_3nf.1} parent=5 // pred_check
        _
      $region10: #{painn_update_3nf.1} parent=5 // pred_check_branch
        %237 = sbr.rel (%p234) target = $region12
      $region11: #{painn_update_3nf.1} parent=5 // pred_region
        %s238 = ssub.s32 %s15, 1
        // Predicated region
        $region13: #{painn_update_3nf.1} parent=11 // pred_check
          %p239 = pneg %p88
        $region14: #{painn_update_3nf.1} parent=11 // pred_check_branch
          %241 = sbr.rel (%p239) target = $region16
        $region15: #{painn_update_3nf.1} parent=11 // pred_region
          _
        $region16: #{painn_update_3nf.1} parent=11 // pred_fallthru
          _
        // Predicated region
        $region17: #{painn_update_3nf.1} parent=11 // pred_check
          %p242 = pneg %p109
        $region18: #{painn_update_3nf.1} parent=11 // pred_check_branch
          %244 = sbr.rel (%p242) target = $region20
        $region19: #{painn_update_3nf.1} parent=11 // pred_region
          _
        $region20: #{painn_update_3nf.1} parent=11 // pred_fallthru
          _
        // Predicated region
        $region21: #{painn_update_3nf.1} parent=11 // pred_check
          %p245 = pneg %p130
        $region22: #{painn_update_3nf.1} parent=11 // pred_check_branch
          %247 = sbr.rel (%p245) target = $region24
        $region23: #{painn_update_3nf.1} parent=11 // pred_region
          _
        $region24: #{painn_update_3nf.1} parent=11 // pred_fallthru
          _
        // Predicated region
        $region25: #{painn_update_3nf.1} parent=11 // pred_check
          %p248 = pneg %p151
        $region26: #{painn_update_3nf.1} parent=11 // pred_check_branch
          %250 = sbr.rel (%p248) target = $region28
        $region27: #{painn_update_3nf.1} parent=11 // pred_region
          _
        $region28: #{painn_update_3nf.1} parent=11 // pred_fallthru
          _
        // Predicated region
        $region29: #{painn_update_3nf.1} parent=11 // pred_check
          %p251 = pneg %p172
        $region30: #{painn_update_3nf.1} parent=11 // pred_check_branch
          %253 = sbr.rel (%p251) target = $region32
        $region31: #{painn_update_3nf.1} parent=11 // pred_region
          _
        $region32: #{painn_update_3nf.1} parent=11 // pred_fallthru
          _
      $region12: #{painn_update_3nf.1} parent=5 // pred_fallthru
        _
      %p254 = scmp.lt.s32.totalorder %s15, 4
      // Predicated region
      $region33: #{painn_update_3nf.1} parent=5 // pred_check
        %p255 = pneg %p254
      $region34: #{painn_update_3nf.1} parent=5 // pred_check_branch
        %257 = sbr.rel (%p255) target = $region36
      $region35: #{painn_update_3nf.1} parent=5 // pred_region
        // Predicated region
        $region37: #{painn_update_3nf.1} parent=35 // pred_check
          %p258 = pneg %p35
        $region38: #{painn_update_3nf.1} parent=35 // pred_check_branch
          %260 = sbr.rel (%p258) target = $region40
        $region39: #{painn_update_3nf.1} parent=35 // pred_region
          %s261 = smul.u32 16, %s15
          %p262 = scmp.lt.s32.totalorder %s261, 63
          %s263 = scalar_select %p262, %s261, 63
          %s264 = smul.addr %s263, 8
          %s265 = scalar_lea.vmem %s0, %s264
          %s266 = smul.u32 16, %s15
        $region40: #{painn_update_3nf.1} parent=35 // pred_fallthru
          _
        // Predicated region
        $region41: #{painn_update_3nf.1} parent=35 // pred_check
          %p267 = pneg %p61
        $region42: #{painn_update_3nf.1} parent=35 // pred_check_branch
          %269 = sbr.rel (%p267) target = $region44
        $region43: #{painn_update_3nf.1} parent=35 // pred_region
          %s270 = sand.u32 %s51, 1
          %s271 = sand.u32 %s51, 1
          %s272 = smul.addr %s271, 384
          %s273 = scalar_lea.vmem [#allocation2], %s272
          %s274 = smul.u32 16, %s15
          %s275 = smul.addr %s274, 8
          %s276 = scalar_lea.vmem %s1, %s275
          // Predicated region
          $region45: #{painn_update_3nf.1} parent=43 // pred_check
            _
          $region46: #{painn_update_3nf.1} parent=43 // pred_check_branch
            %278 = sbr.rel (0) target = $region48
          $region47: #{painn_update_3nf.1} parent=43 // pred_region
            // Predicated region
            $region49: #{painn_update_3nf.1} parent=47 // pred_check
              _
            $region50: #{painn_update_3nf.1} parent=47 // pred_check_branch
              %280 = sbr.rel (0) target = $region52
            $region51: #{painn_update_3nf.1} parent=47 // pred_region
              // Predicated region
              $region64: #{painn_update_3nf.1} parent=51 // pred_check
                _
              $region65: #{painn_update_3nf.1} parent=51 // pred_check_branch
                %390 = sbr.rel (0) target = $region67
              $region66: #{painn_update_3nf.1} parent=51 // pred_region
                loop: start=0, step=1, limit=1
                $region68: #{painn_update_3nf.1} parent=66 // loop_pre_header
                  _
                $region69: #{painn_update_3nf.1} parent=66 // loop_header
                  %s392 = sphi 0, %s396
                  %p393 = scmp.ge.s32.totalorder %s392, 1
                  %s397 = sphi %s276, %s276
                  %s398 = sphi %s273, %s273
                $region70: #{painn_update_3nf.1} parent=66 // loop_header_branch
                  %395 = sbr.rel (%p393) target = $region74
                $region71: #{painn_update_3nf.1} parent=66 // loop_body
                  %v399 = vld [vmem:[%s397] sm:$0xff]
                  %400 = vst [vmem:[%s398] sm:$0xff] %v399
                  %v401 = vld [vmem:[%s397 + $0x8] sm:$0xff]
                  %402 = vst [vmem:[%s398 + $0x8] sm:$0xff] %v401
                  %v403 = vld [vmem:[%s397 + $0x10] sm:$0xff]
                  %404 = vst [vmem:[%s398 + $0x10] sm:$0xff] %v403
                  %v405 = vld [vmem:[%s397 + $0x18] sm:$0xff]
                  %406 = vst [vmem:[%s398 + $0x18] sm:$0xff] %v405
                  %v407 = vld [vmem:[%s397 + $0x20] sm:$0xff]
                  %408 = vst [vmem:[%s398 + $0x20] sm:$0xff] %v407
                  %v409 = vld [vmem:[%s397 + $0x28] sm:$0xff]
                  %410 = vst [vmem:[%s398 + $0x28] sm:$0xff] %v409
                  %v411 = vld [vmem:[%s397 + $0x30] sm:$0xff]
                  %412 = vst [vmem:[%s398 + $0x30] sm:$0xff] %v411
                  %v413 = vld [vmem:[%s397 + $0x38] sm:$0xff]
                  %414 = vst [vmem:[%s398 + $0x38] sm:$0xff] %v413
                  %v415 = vld [vmem:[%s397 + $0x40] sm:$0xff]
                  %416 = vst [vmem:[%s398 + $0x40] sm:$0xff] %v415
                  %v417 = vld [vmem:[%s397 + $0x48] sm:$0xff]
                  %418 = vst [vmem:[%s398 + $0x48] sm:$0xff] %v417
                  %v419 = vld [vmem:[%s397 + $0x50] sm:$0xff]
                  %420 = vst [vmem:[%s398 + $0x50] sm:$0xff] %v419
                  %v421 = vld [vmem:[%s397 + $0x58] sm:$0xff]
                  %422 = vst [vmem:[%s398 + $0x58] sm:$0xff] %v421
                  %v423 = vld [vmem:[%s397 + $0x60] sm:$0xff]
                  %424 = vst [vmem:[%s398 + $0x60] sm:$0xff] %v423
                  %v425 = vld [vmem:[%s397 + $0x68] sm:$0xff]
                  %426 = vst [vmem:[%s398 + $0x68] sm:$0xff] %v425
                  %v427 = vld [vmem:[%s397 + $0x70] sm:$0xff]
                  %428 = vst [vmem:[%s398 + $0x70] sm:$0xff] %v427
                  %v429 = vld [vmem:[%s397 + $0x78] sm:$0xff]
                  %430 = vst [vmem:[%s398 + $0x78] sm:$0xff] %v429
                  %v431 = vld [vmem:[%s397 + $0x200] sm:$0xff]
                  %432 = vst [vmem:[%s398 + $0x80] sm:$0xff] %v431
                  %v433 = vld [vmem:[%s397 + $0x208] sm:$0xff]
                  %434 = vst [vmem:[%s398 + $0x88] sm:$0xff] %v433
                  %v435 = vld [vmem:[%s397 + $0x210] sm:$0xff]
                  %436 = vst [vmem:[%s398 + $0x90] sm:$0xff] %v435
                  %v437 = vld [vmem:[%s397 + $0x218] sm:$0xff]
                  %438 = vst [vmem:[%s398 + $0x98] sm:$0xff] %v437
                  %v439 = vld [vmem:[%s397 + $0x220] sm:$0xff]
                  %440 = vst [vmem:[%s398 + $0xa0] sm:$0xff] %v439
                  %v441 = vld [vmem:[%s397 + $0x228] sm:$0xff]
                  %442 = vst [vmem:[%s398 + $0xa8] sm:$0xff] %v441
                  %v443 = vld [vmem:[%s397 + $0x230] sm:$0xff]
                  %444 = vst [vmem:[%s398 + $0xb0] sm:$0xff] %v443
                  %v445 = vld [vmem:[%s397 + $0x238] sm:$0xff]
                  %446 = vst [vmem:[%s398 + $0xb8] sm:$0xff] %v445
                  %v447 = vld [vmem:[%s397 + $0x240] sm:$0xff]
                  %448 = vst [vmem:[%s398 + $0xc0] sm:$0xff] %v447
                  %v449 = vld [vmem:[%s397 + $0x248] sm:$0xff]
                  %450 = vst [vmem:[%s398 + $0xc8] sm:$0xff] %v449
                  %v451 = vld [vmem:[%s397 + $0x250] sm:$0xff]
                  %452 = vst [vmem:[%s398 + $0xd0] sm:$0xff] %v451
                  %v453 = vld [vmem:[%s397 + $0x258] sm:$0xff]
                  %454 = vst [vmem:[%s398 + $0xd8] sm:$0xff] %v453
                  %v455 = vld [vmem:[%s397 + $0x260] sm:$0xff]
                  %456 = vst [vmem:[%s398 + $0xe0] sm:$0xff] %v455
                  %v457 = vld [vmem:[%s397 + $0x268] sm:$0xff]
                  %458 = vst [vmem:[%s398 + $0xe8] sm:$0xff] %v457
                  %v459 = vld [vmem:[%s397 + $0x270] sm:$0xff]
                  %460 = vst [vmem:[%s398 + $0xf0] sm:$0xff] %v459
                  %v461 = vld [vmem:[%s397 + $0x278] sm:$0xff]
                  %462 = vst [vmem:[%s398 + $0xf8] sm:$0xff] %v461
                  %v463 = vld [vmem:[%s397 + $0x400] sm:$0xff]
                  %464 = vst [vmem:[%s398 + $0x100] sm:$0xff] %v463
                  %v465 = vld [vmem:[%s397 + $0x408] sm:$0xff]
                  %466 = vst [vmem:[%s398 + $0x108] sm:$0xff] %v465
                  %v467 = vld [vmem:[%s397 + $0x410] sm:$0xff]
                  %468 = vst [vmem:[%s398 + $0x110] sm:$0xff] %v467
                  %v469 = vld [vmem:[%s397 + $0x418] sm:$0xff]
                  %470 = vst [vmem:[%s398 + $0x118] sm:$0xff] %v469
                  %v471 = vld [vmem:[%s397 + $0x420] sm:$0xff]
                  %472 = vst [vmem:[%s398 + $0x120] sm:$0xff] %v471
                  %v473 = vld [vmem:[%s397 + $0x428] sm:$0xff]
                  %474 = vst [vmem:[%s398 + $0x128] sm:$0xff] %v473
                  %v475 = vld [vmem:[%s397 + $0x430] sm:$0xff]
                  %476 = vst [vmem:[%s398 + $0x130] sm:$0xff] %v475
                  %v477 = vld [vmem:[%s397 + $0x438] sm:$0xff]
                  %478 = vst [vmem:[%s398 + $0x138] sm:$0xff] %v477
                  %v479 = vld [vmem:[%s397 + $0x440] sm:$0xff]
                  %480 = vst [vmem:[%s398 + $0x140] sm:$0xff] %v479
                  %v481 = vld [vmem:[%s397 + $0x448] sm:$0xff]
                  %482 = vst [vmem:[%s398 + $0x148] sm:$0xff] %v481
                  %v483 = vld [vmem:[%s397 + $0x450] sm:$0xff]
                  %484 = vst [vmem:[%s398 + $0x150] sm:$0xff] %v483
                  %v485 = vld [vmem:[%s397 + $0x458] sm:$0xff]
                  %486 = vst [vmem:[%s398 + $0x158] sm:$0xff] %v485
                  %v487 = vld [vmem:[%s397 + $0x460] sm:$0xff]
                  %488 = vst [vmem:[%s398 + $0x160] sm:$0xff] %v487
                  %v489 = vld [vmem:[%s397 + $0x468] sm:$0xff]
                  %490 = vst [vmem:[%s398 + $0x168] sm:$0xff] %v489
                  %v491 = vld [vmem:[%s397 + $0x470] sm:$0xff]
                  %492 = vst [vmem:[%s398 + $0x170] sm:$0xff] %v491
                  %v493 = vld [vmem:[%s397 + $0x478] sm:$0xff]
                  %494 = vst [vmem:[%s398 + $0x178] sm:$0xff] %v493
                $region72: #{painn_update_3nf.1} parent=66 // loop_footer
                  %s396 = sadd.s32 1, %s392
                $region73: #{painn_update_3nf.1} parent=66 // loop_footer_branch
                  %391 = sbr.rel target = $region69
                $region74: #{painn_update_3nf.1} parent=66 // loop_exit
                  _
              $region67: #{painn_update_3nf.1} parent=51 // pred_fallthru
                _
              // Predicated region
              $region75: #{painn_update_3nf.1} parent=51 // pred_check
                _
              $region76: #{painn_update_3nf.1} parent=51 // pred_check_branch
                %496 = sbr.rel target = $region78
              $region77: #{painn_update_3nf.1} parent=51 // pred_region
                _
              $region78: #{painn_update_3nf.1} parent=51 // pred_fallthru
                _
            $region52: #{painn_update_3nf.1} parent=47 // pred_fallthru
              _
            // Predicated region
            $region53: #{painn_update_3nf.1} parent=47 // pred_check
              _
            $region54: #{painn_update_3nf.1} parent=47 // pred_check_branch
              %282 = sbr.rel target = $region56
            $region55: #{painn_update_3nf.1} parent=47 // pred_region
              %s284 = ssub.s32 256, 1
              loop: start=0, step=1, limit=1
              $region57: #{painn_update_3nf.1} parent=55 // loop_pre_header
                _
              $region58: #{painn_update_3nf.1} parent=55 // loop_header
                %s286 = sphi 0, %s290
                %p287 = scmp.ge.s32.totalorder %s286, 1
                %s291 = sphi %s276, %s276
                %s292 = sphi %s273, %s273
              $region59: #{painn_update_3nf.1} parent=55 // loop_header_branch
                %289 = sbr.rel (%p287) target = $region63
              $region60: #{painn_update_3nf.1} parent=55 // loop_body
                %v293 = vld [vmem:[%s291] sm:%s284]
                %294 = vst [vmem:[%s292] sm:%s284] %v293
                %v295 = vld [vmem:[%s291 + $0x8] sm:%s284]
                %296 = vst [vmem:[%s292 + $0x8] sm:%s284] %v295
                %v297 = vld [vmem:[%s291 + $0x10] sm:%s284]
                %298 = vst [vmem:[%s292 + $0x10] sm:%s284] %v297
                %v299 = vld [vmem:[%s291 + $0x18] sm:%s284]
                %300 = vst [vmem:[%s292 + $0x18] sm:%s284] %v299
                %v301 = vld [vmem:[%s291 + $0x20] sm:%s284]
                %302 = vst [vmem:[%s292 + $0x20] sm:%s284] %v301
                %v303 = vld [vmem:[%s291 + $0x28] sm:%s284]
                %304 = vst [vmem:[%s292 + $0x28] sm:%s284] %v303
                %v305 = vld [vmem:[%s291 + $0x30] sm:%s284]
                %306 = vst [vmem:[%s292 + $0x30] sm:%s284] %v305
                %v307 = vld [vmem:[%s291 + $0x38] sm:%s284]
                %308 = vst [vmem:[%s292 + $0x38] sm:%s284] %v307
                %v309 = vld [vmem:[%s291 + $0x40] sm:%s284]
                %310 = vst [vmem:[%s292 + $0x40] sm:%s284] %v309
                %v311 = vld [vmem:[%s291 + $0x48] sm:%s284]
                %312 = vst [vmem:[%s292 + $0x48] sm:%s284] %v311
                %v313 = vld [vmem:[%s291 + $0x50] sm:%s284]
                %314 = vst [vmem:[%s292 + $0x50] sm:%s284] %v313
                %v315 = vld [vmem:[%s291 + $0x58] sm:%s284]
                %316 = vst [vmem:[%s292 + $0x58] sm:%s284] %v315
                %v317 = vld [vmem:[%s291 + $0x60] sm:%s284]
                %318 = vst [vmem:[%s292 + $0x60] sm:%s284] %v317
                %v319 = vld [vmem:[%s291 + $0x68] sm:%s284]
                %320 = vst [vmem:[%s292 + $0x68] sm:%s284] %v319
                %v321 = vld [vmem:[%s291 + $0x70] sm:%s284]
                %322 = vst [vmem:[%s292 + $0x70] sm:%s284] %v321
                %v323 = vld [vmem:[%s291 + $0x78] sm:%s284]
                %324 = vst [vmem:[%s292 + $0x78] sm:%s284] %v323
                %v325 = vld [vmem:[%s291 + $0x200] sm:%s284]
                %326 = vst [vmem:[%s292 + $0x80] sm:%s284] %v325
                %v327 = vld [vmem:[%s291 + $0x208] sm:%s284]
                %328 = vst [vmem:[%s292 + $0x88] sm:%s284] %v327
                %v329 = vld [vmem:[%s291 + $0x210] sm:%s284]
                %330 = vst [vmem:[%s292 + $0x90] sm:%s284] %v329
                %v331 = vld [vmem:[%s291 + $0x218] sm:%s284]
                %332 = vst [vmem:[%s292 + $0x98] sm:%s284] %v331
                %v333 = vld [vmem:[%s291 + $0x220] sm:%s284]
                %334 = vst [vmem:[%s292 + $0xa0] sm:%s284] %v333
                %v335 = vld [vmem:[%s291 + $0x228] sm:%s284]
                %336 = vst [vmem:[%s292 + $0xa8] sm:%s284] %v335
                %v337 = vld [vmem:[%s291 + $0x230] sm:%s284]
                %338 = vst [vmem:[%s292 + $0xb0] sm:%s284] %v337
                %v339 = vld [vmem:[%s291 + $0x238] sm:%s284]
                %340 = vst [vmem:[%s292 + $0xb8] sm:%s284] %v339
                %v341 = vld [vmem:[%s291 + $0x240] sm:%s284]
                %342 = vst [vmem:[%s292 + $0xc0] sm:%s284] %v341
                %v343 = vld [vmem:[%s291 + $0x248] sm:%s284]
                %344 = vst [vmem:[%s292 + $0xc8] sm:%s284] %v343
                %v345 = vld [vmem:[%s291 + $0x250] sm:%s284]
                %346 = vst [vmem:[%s292 + $0xd0] sm:%s284] %v345
                %v347 = vld [vmem:[%s291 + $0x258] sm:%s284]
                %348 = vst [vmem:[%s292 + $0xd8] sm:%s284] %v347
                %v349 = vld [vmem:[%s291 + $0x260] sm:%s284]
                %350 = vst [vmem:[%s292 + $0xe0] sm:%s284] %v349
                %v351 = vld [vmem:[%s291 + $0x268] sm:%s284]
                %352 = vst [vmem:[%s292 + $0xe8] sm:%s284] %v351
                %v353 = vld [vmem:[%s291 + $0x270] sm:%s284]
                %354 = vst [vmem:[%s292 + $0xf0] sm:%s284] %v353
                %v355 = vld [vmem:[%s291 + $0x278] sm:%s284]
                %356 = vst [vmem:[%s292 + $0xf8] sm:%s284] %v355
                %v357 = vld [vmem:[%s291 + $0x400] sm:%s284]
                %358 = vst [vmem:[%s292 + $0x100] sm:%s284] %v357
                %v359 = vld [vmem:[%s291 + $0x408] sm:%s284]
                %360 = vst [vmem:[%s292 + $0x108] sm:%s284] %v359
                %v361 = vld [vmem:[%s291 + $0x410] sm:%s284]
                %362 = vst [vmem:[%s292 + $0x110] sm:%s284] %v361
                %v363 = vld [vmem:[%s291 + $0x418] sm:%s284]
                %364 = vst [vmem:[%s292 + $0x118] sm:%s284] %v363
                %v365 = vld [vmem:[%s291 + $0x420] sm:%s284]
                %366 = vst [vmem:[%s292 + $0x120] sm:%s284] %v365
                %v367 = vld [vmem:[%s291 + $0x428] sm:%s284]
                %368 = vst [vmem:[%s292 + $0x128] sm:%s284] %v367
                %v369 = vld [vmem:[%s291 + $0x430] sm:%s284]
                %370 = vst [vmem:[%s292 + $0x130] sm:%s284] %v369
                %v371 = vld [vmem:[%s291 + $0x438] sm:%s284]
                %372 = vst [vmem:[%s292 + $0x138] sm:%s284] %v371
                %v373 = vld [vmem:[%s291 + $0x440] sm:%s284]
                %374 = vst [vmem:[%s292 + $0x140] sm:%s284] %v373
                %v375 = vld [vmem:[%s291 + $0x448] sm:%s284]
                %376 = vst [vmem:[%s292 + $0x148] sm:%s284] %v375
                %v377 = vld [vmem:[%s291 + $0x450] sm:%s284]
                %378 = vst [vmem:[%s292 + $0x150] sm:%s284] %v377
                %v379 = vld [vmem:[%s291 + $0x458] sm:%s284]
                %380 = vst [vmem:[%s292 + $0x158] sm:%s284] %v379
                %v381 = vld [vmem:[%s291 + $0x460] sm:%s284]
                %382 = vst [vmem:[%s292 + $0x160] sm:%s284] %v381
                %v383 = vld [vmem:[%s291 + $0x468] sm:%s284]
                %384 = vst [vmem:[%s292 + $0x168] sm:%s284] %v383
                %v385 = vld [vmem:[%s291 + $0x470] sm:%s284]
                %386 = vst [vmem:[%s292 + $0x170] sm:%s284] %v385
                %v387 = vld [vmem:[%s291 + $0x478] sm:%s284]
                %388 = vst [vmem:[%s292 + $0x178] sm:%s284] %v387
              $region61: #{painn_update_3nf.1} parent=55 // loop_footer
                %s290 = sadd.s32 1, %s286
              $region62: #{painn_update_3nf.1} parent=55 // loop_footer_branch
                %285 = sbr.rel target = $region58
              $region63: #{painn_update_3nf.1} parent=55 // loop_exit
                _
            $region56: #{painn_update_3nf.1} parent=47 // pred_fallthru
              _
          $region48: #{painn_update_3nf.1} parent=43 // pred_fallthru
            _
          %497 = vnop
        $region44: #{painn_update_3nf.1} parent=35 // pred_fallthru
          _
      $region36: #{painn_update_3nf.1} parent=5 // pred_fallthru
        _
      %p498 = scmp.le.s32.totalorder 1, %s15
      %p499 = scmp.lt.s32.totalorder %s15, 5
      %p500 = pnand %p498, %p499
      %p501 = pneg %p500
      // Predicated region
      $region79: #{painn_update_3nf.1} parent=5 // pred_check
        _
      $region80: #{painn_update_3nf.1} parent=5 // pred_check_branch
        %503 = sbr.rel (%p500) target = $region82
      $region81: #{painn_update_3nf.1} parent=5 // pred_region
        %s504 = ssub.s32 %s15, 1
        %s505 = sand.u32 %s54, 1
        %s506 = sand.u32 %s54, 1
        %s507 = smul.addr %s506, 384
        %s508 = scalar_lea.vmem [#allocation2], %s507
        // Predicated region
        $region83: #{painn_update_3nf.1} parent=81 // pred_check
          %p509 = pneg %p67
        $region84: #{painn_update_3nf.1} parent=81 // pred_check_branch
          %511 = sbr.rel (%p509) target = $region86
        $region85: #{painn_update_3nf.1} parent=81 // pred_region
          _
        $region86: #{painn_update_3nf.1} parent=81 // pred_fallthru
          _
        %s512 = smul.u32 16, %s20
        %p513 = scmp.lt.s32.totalorder %s512, 63
        %s514 = scalar_select %p513, %s512, 63
        %s515 = smul.addr %s514, 8
        %s516 = scalar_lea.vmem %s0, %s515
        %p517 = pneg %p41
        %p518 = pneg %p38
        %s519 = sand.u32 %s54, 1
        %s520 = sand.u32 %s54, 1
        %s521 = smul.addr %s520, 384
        %s522 = scalar_lea.vmem [#allocation2], %s521
        %p523 = pneg %p67
        %p524 = pneg %p64
        %p525 = pneg %p88
        %p526 = pneg %p85
        %p527 = pneg %p109
        %p528 = pneg %p106
        %p529 = pneg %p130
        %p530 = pneg %p127
        %p531 = pneg %p151
        %p532 = pneg %p148
        %p533 = pneg %p172
        %p534 = pneg %p169
        %p535 = pneg %p198
        %p536 = pneg %p195
        %s537 = smul.u32 16, %s20
        %p538 = scmp.lt.s32.totalorder %s537, 63
        %s539 = scalar_select %p538, %s537, 63
        %s540 = smul.addr %s539, 8
        %s541 = scalar_lea.vmem %s7, %s540
        %p542 = pneg %p224
        %p543 = pneg %p221
        %s544 = sand.u32 %s211, 1
        %s545 = sand.u32 %s211, 1
        %s546 = smul.addr %s545, 384
        %s547 = scalar_lea.vmem [#allocation3], %s546
        %s548 = smul.u32 16, %s20
        %p549 = scmp.lt.s32.totalorder %s548, 63
        %s550 = scalar_select %p549, %s548, 63
        %s551 = smul.addr %s550, 8
        %s552 = scalar_lea.vmem %s0, %s551
        %s553 = smul.u32 16, %s20
        %s554 = smul.u32 16, %s20
        %s555 = smul.u32 16, %s20
        %p556 = scmp.lt.s32.totalorder %s555, 63
        %s557 = scalar_select %p556, %s555, 63
        %s558 = smul.addr %s557, 8
        %s559 = scalar_lea.vmem %s7, %s558
        %s560 = smul.u32 16, %s20
        %s561 = smul.u32 16, %s20
        %v562 = vld [vmem:[%s552] sm:$0xff]
        %v563 = vld [vmem:[%s552 + $0x8] sm:$0xff]
        %v564 = vld [vmem:[%s552 + $0x10] sm:$0xff]
        %v565 = vld [vmem:[%s552 + $0x18] sm:$0xff]
        %v566 = vld [vmem:[%s552 + $0x20] sm:$0xff]
        %v567 = vld [vmem:[%s552 + $0x28] sm:$0xff]
        %v568 = vld [vmem:[%s552 + $0x30] sm:$0xff]
        %v569 = vld [vmem:[%s552 + $0x38] sm:$0xff]
        %v570 = vld [vmem:[%s552 + $0x40] sm:$0xff]
        %v571 = vld [vmem:[%s552 + $0x48] sm:$0xff]
        %v572 = vld [vmem:[%s552 + $0x50] sm:$0xff]
        %v573 = vld [vmem:[%s552 + $0x58] sm:$0xff]
        %v574 = vld [vmem:[%s552 + $0x60] sm:$0xff]
        %v575 = vld [vmem:[%s552 + $0x68] sm:$0xff]
        %v576 = vld [vmem:[%s552 + $0x70] sm:$0xff]
        %v577 = vld [vmem:[%s552 + $0x78] sm:$0xff]
        %v578 = vld [vmem:[%s508] sm:$0xff]
        %v579 = vld [vmem:[%s508 + $0x8] sm:$0xff]
        %v580 = vld [vmem:[%s508 + $0x10] sm:$0xff]
        %v581 = vld [vmem:[%s508 + $0x18] sm:$0xff]
        %v582 = vld [vmem:[%s508 + $0x20] sm:$0xff]
        %v583 = vld [vmem:[%s508 + $0x28] sm:$0xff]
        %v584 = vld [vmem:[%s508 + $0x30] sm:$0xff]
        %v585 = vld [vmem:[%s508 + $0x38] sm:$0xff]
        %v586 = vld [vmem:[%s508 + $0x40] sm:$0xff]
        %v587 = vld [vmem:[%s508 + $0x48] sm:$0xff]
        %v588 = vld [vmem:[%s508 + $0x50] sm:$0xff]
        %v589 = vld [vmem:[%s508 + $0x58] sm:$0xff]
        %v590 = vld [vmem:[%s508 + $0x60] sm:$0xff]
        %v591 = vld [vmem:[%s508 + $0x68] sm:$0xff]
        %v592 = vld [vmem:[%s508 + $0x70] sm:$0xff]
        %v593 = vld [vmem:[%s508 + $0x78] sm:$0xff]
        %v594 = vld [vmem:[%s508 + $0x80] sm:$0xff]
        %v595 = vld [vmem:[%s508 + $0x88] sm:$0xff]
        %v596 = vld [vmem:[%s508 + $0x90] sm:$0xff]
        %v597 = vld [vmem:[%s508 + $0x98] sm:$0xff]
        %v598 = vld [vmem:[%s508 + $0xa0] sm:$0xff]
        %v599 = vld [vmem:[%s508 + $0xa8] sm:$0xff]
        %v600 = vld [vmem:[%s508 + $0xb0] sm:$0xff]
        %v601 = vld [vmem:[%s508 + $0xb8] sm:$0xff]
        %v602 = vld [vmem:[%s508 + $0xc0] sm:$0xff]
        %v603 = vld [vmem:[%s508 + $0xc8] sm:$0xff]
        %v604 = vld [vmem:[%s508 + $0xd0] sm:$0xff]
        %v605 = vld [vmem:[%s508 + $0xd8] sm:$0xff]
        %v606 = vld [vmem:[%s508 + $0xe0] sm:$0xff]
        %v607 = vld [vmem:[%s508 + $0xe8] sm:$0xff]
        %v608 = vld [vmem:[%s508 + $0xf0] sm:$0xff]
        %v609 = vld [vmem:[%s508 + $0xf8] sm:$0xff]
        %v610 = vld [vmem:[%s508 + $0x100] sm:$0xff]
        %v611 = vld [vmem:[%s508 + $0x108] sm:$0xff]
        %v612 = vld [vmem:[%s508 + $0x110] sm:$0xff]
        %v613 = vld [vmem:[%s508 + $0x118] sm:$0xff]
        %v614 = vld [vmem:[%s508 + $0x120] sm:$0xff]
        %v615 = vld [vmem:[%s508 + $0x128] sm:$0xff]
        %v616 = vld [vmem:[%s508 + $0x130] sm:$0xff]
        %v617 = vld [vmem:[%s508 + $0x138] sm:$0xff]
        %v618 = vld [vmem:[%s508 + $0x140] sm:$0xff]
        %v619 = vld [vmem:[%s508 + $0x148] sm:$0xff]
        %v620 = vld [vmem:[%s508 + $0x150] sm:$0xff]
        %v621 = vld [vmem:[%s508 + $0x158] sm:$0xff]
        %v622 = vld [vmem:[%s508 + $0x160] sm:$0xff]
        %v623 = vld [vmem:[%s508 + $0x168] sm:$0xff]
        %v624 = vld [vmem:[%s508 + $0x170] sm:$0xff]
        %v625 = vld [vmem:[%s508 + $0x178] sm:$0xff]
        %v626 = vld [vmem:[%s2] sm:$0xff]
        %v627 = vld [vmem:[%s2 + $0x8] sm:$0xff]
        %v628 = vld [vmem:[%s2 + $0x10] sm:$0xff]
        %v629 = vld [vmem:[%s2 + $0x18] sm:$0xff]
        %vm630 = vcmask 261120
        %v632 = vsel %vm630, %v578, 0
        %v635 = vsel %vm630, %v579, 0
        %v638 = vsel %vm630, %v580, 0
        %v641 = vsel %vm630, %v581, 0
        %v644 = vsel %vm630, %v582, 0
        %v647 = vsel %vm630, %v583, 0
        %v650 = vsel %vm630, %v584, 0
        %v653 = vsel %vm630, %v585, 0
        %v656 = vsel %vm630, %v586, 0
        %v659 = vsel %vm630, %v587, 0
        %v662 = vsel %vm630, %v588, 0
        %v665 = vsel %vm630, %v589, 0
        %v668 = vsel %vm630, %v590, 0
        %v671 = vsel %vm630, %v591, 0
        %v674 = vsel %vm630, %v592, 0
        %v677 = vsel %vm630, %v593, 0
        %v680 = vsel %vm630, %v594, 0
        %v683 = vsel %vm630, %v595, 0
        %v686 = vsel %vm630, %v596, 0
        %v689 = vsel %vm630, %v597, 0
        %v692 = vsel %vm630, %v598, 0
        %v695 = vsel %vm630, %v599, 0
        %v698 = vsel %vm630, %v600, 0
        %v701 = vsel %vm630, %v601, 0
        %v704 = vsel %vm630, %v602, 0
        %v707 = vsel %vm630, %v603, 0
        %v710 = vsel %vm630, %v604, 0
        %v713 = vsel %vm630, %v605, 0
        %v716 = vsel %vm630, %v606, 0
        %v719 = vsel %vm630, %v607, 0
        %v722 = vsel %vm630, %v608, 0
        %v725 = vsel %vm630, %v609, 0
        %v728 = vsel %vm630, %v610, 0
        %v731 = vsel %vm630, %v611, 0
        %v734 = vsel %vm630, %v612, 0
        %v737 = vsel %vm630, %v613, 0
        %v740 = vsel %vm630, %v614, 0
        %v743 = vsel %vm630, %v615, 0
        %v746 = vsel %vm630, %v616, 0
        %v749 = vsel %vm630, %v617, 0
        %v752 = vsel %vm630, %v618, 0
        %v755 = vsel %vm630, %v619, 0
        %v758 = vsel %vm630, %v620, 0
        %v761 = vsel %vm630, %v621, 0
        %v764 = vsel %vm630, %v622, 0
        %v767 = vsel %vm630, %v623, 0
        %v770 = vsel %vm630, %v624, 0
        %v773 = vsel %vm630, %v625, 0
        %775 = vmatprep.subr.mxu0 0.0
        %776 = vmatpush1.msra.mxu0 0.0
        %777 = vmatprep.subr.mxu0 0.0
        %778 = vmatpush1.msra.mxu0 0.0
        %779 = vmatprep.subr.mxu0 0.0
        %780 = vmatpush1.msra.mxu0 0.0
        %781 = vmatprep.subr.mxu0 0.0
        %782 = vmatpush1.msra.mxu0 0.0
        %783 = vmatprep.subr.mxu0 0.0
        %784 = vmatpush1.msra.mxu0 0.0
        %785 = vmatprep.subr.mxu0 0.0
        %786 = vmatpush1.msra.mxu0 0.0
        %787 = vmatprep.subr.mxu0 0.0
        %788 = vmatpush1.msra.mxu0 0.0
        %789 = vmatprep.subr.mxu0 0.0
        %790 = vmatpush1.msra.mxu0 0.0
        %791 = vmatprep.subr.mxu0 0.0
        %792 = vmatpush1.msra.mxu0 0.0
        %793 = vmatprep.subr.mxu0 0.0
        %794 = vmatpush1.msra.mxu0 0.0
        %795 = vmatprep.subr.mxu0 0.0
        %796 = vmatpush1.msra.mxu0 0.0
        %797 = vmatprep.subr.mxu0 0.0
        %798 = vmatpush1.msra.mxu0 0.0
        %799 = vmatprep.subr.mxu0 0.0
        %800 = vmatpush1.msra.mxu0 %v629
        %801 = vmatprep.subr.mxu0 0.0
        %802 = vmatpush1.msra.mxu0 %v628
        %803 = vmatprep.subr.mxu0 0.0
        %804 = vmatpush1.msra.mxu0 %v627
        %805 = vmatprep.subr.mxu0 0.0
        %806 = vmatpush1.msra.mxu0 %v626
        %807 = vmatprep.subr.mxu0 0.0
        %808 = vmatpush2.msra.mxu0 0.0
        %809 = vmatprep.subr.mxu0 0.0
        %810 = vmatpush2.msra.mxu0 0.0
        %811 = vmatprep.subr.mxu0 0.0
        %812 = vmatpush2.msra.mxu0 0.0
        %813 = vmatprep.subr.mxu0 0.0
        %814 = vmatpush2.msra.mxu0 0.0
        %815 = vmatprep.subr.mxu0 0.0
        %816 = vmatpush2.msra.mxu0 0.0
        %817 = vmatprep.subr.mxu0 0.0
        %818 = vmatpush2.msra.mxu0 0.0
        %819 = vmatprep.subr.mxu0 0.0
        %820 = vmatpush2.msra.mxu0 0.0
        %821 = vmatprep.subr.mxu0 0.0
        %822 = vmatpush2.msra.mxu0 0.0
        %823 = vmatprep.subr.mxu0 0.0
        %824 = vmatpush2.msra.mxu0 0.0
        %825 = vmatprep.subr.mxu0 0.0
        %826 = vmatpush2.msra.mxu0 0.0
        %827 = vmatprep.subr.mxu0 0.0
        %828 = vmatpush2.msra.mxu0 0.0
        %829 = vmatprep.subr.mxu0 0.0
        %830 = vmatpush2.msra.mxu0 0.0
        %831 = vmatprep.subr.mxu0 0.0
        %832 = vmatpush2.msra.mxu0 0.0
        %833 = vmatprep.subr.mxu0 0.0
        %834 = vmatpush2.msra.mxu0 0.0
        %835 = vmatprep.subr.mxu0 0.0
        %836 = vmatpush2.msra.mxu0 0.0
        %837 = vmatprep.subr.mxu0 0.0
        %838 = vmatpush2.msra.mxu0 0.0
        %839 = vmatprep.mubr.f32.mxu0 0.0
        %840 = vmatmul.mubr.f32.gmra.mxu0 %v632
        %v841 = vpop.f32.mrf.mxu0
        %v842 = vadd.f32 0.0, %v841
        %v843 = vpop.f32.mrf.mxu0
        %844 = vmatprep.mubr.f32.mxu0 0.0
        %845 = vmatmul.mubr.f32.gmra.mxu0 %v635
        %v846 = vpop.f32.mrf.mxu0
        %v847 = vadd.f32 0.0, %v846
        %v848 = vpop.f32.mrf.mxu0
        %849 = vmatprep.mubr.f32.mxu0 0.0
        %850 = vmatmul.mubr.f32.gmra.mxu0 %v638
        %v851 = vpop.f32.mrf.mxu0
        %v852 = vadd.f32 0.0, %v851
        %v853 = vpop.f32.mrf.mxu0
        %854 = vmatprep.mubr.f32.mxu0 0.0
        %855 = vmatmul.mubr.f32.gmra.mxu0 %v641
        %v856 = vpop.f32.mrf.mxu0
        %v857 = vadd.f32 0.0, %v856
        %v858 = vpop.f32.mrf.mxu0
        %859 = vmatprep.mubr.f32.mxu0 0.0
        %860 = vmatmul.mubr.f32.gmra.mxu0 %v644
        %v861 = vpop.f32.mrf.mxu0
        %v862 = vadd.f32 0.0, %v861
        %v863 = vpop.f32.mrf.mxu0
        %864 = vmatprep.mubr.f32.mxu0 0.0
        %865 = vmatmul.mubr.f32.gmra.mxu0 %v647
        %v866 = vpop.f32.mrf.mxu0
        %v867 = vadd.f32 0.0, %v866
        %v868 = vpop.f32.mrf.mxu0
        %869 = vmatprep.mubr.f32.mxu0 0.0
        %870 = vmatmul.mubr.f32.gmra.mxu0 %v650
        %v871 = vpop.f32.mrf.mxu0
        %v872 = vadd.f32 0.0, %v871
        %v873 = vpop.f32.mrf.mxu0
        %874 = vmatprep.mubr.f32.mxu0 0.0
        %875 = vmatmul.mubr.f32.gmra.mxu0 %v653
        %v876 = vpop.f32.mrf.mxu0
        %v877 = vadd.f32 0.0, %v876
        %v878 = vpop.f32.mrf.mxu0
        %879 = vmatprep.mubr.f32.mxu0 0.0
        %880 = vmatmul.mubr.f32.gmra.mxu0 %v656
        %v881 = vpop.f32.mrf.mxu0
        %v882 = vadd.f32 0.0, %v881
        %v883 = vpop.f32.mrf.mxu0
        %884 = vmatprep.mubr.f32.mxu0 0.0
        %885 = vmatmul.mubr.f32.gmra.mxu0 %v659
        %v886 = vpop.f32.mrf.mxu0
        %v887 = vadd.f32 0.0, %v886
        %v888 = vpop.f32.mrf.mxu0
        %889 = vmatprep.mubr.f32.mxu0 0.0
        %890 = vmatmul.mubr.f32.gmra.mxu0 %v662
        %v891 = vpop.f32.mrf.mxu0
        %v892 = vadd.f32 0.0, %v891
        %v893 = vpop.f32.mrf.mxu0
        %894 = vmatprep.mubr.f32.mxu0 0.0
        %895 = vmatmul.mubr.f32.gmra.mxu0 %v665
        %v896 = vpop.f32.mrf.mxu0
        %v897 = vadd.f32 0.0, %v896
        %v898 = vpop.f32.mrf.mxu0
        %899 = vmatprep.mubr.f32.mxu0 0.0
        %900 = vmatmul.mubr.f32.gmra.mxu0 %v668
        %v901 = vpop.f32.mrf.mxu0
        %v902 = vadd.f32 0.0, %v901
        %v903 = vpop.f32.mrf.mxu0
        %904 = vmatprep.mubr.f32.mxu0 0.0
        %905 = vmatmul.mubr.f32.gmra.mxu0 %v671
        %v906 = vpop.f32.mrf.mxu0
        %v907 = vadd.f32 0.0, %v906
        %v908 = vpop.f32.mrf.mxu0
        %909 = vmatprep.mubr.f32.mxu0 0.0
        %910 = vmatmul.mubr.f32.gmra.mxu0 %v674
        %v911 = vpop.f32.mrf.mxu0
        %v912 = vadd.f32 0.0, %v911
        %v913 = vpop.f32.mrf.mxu0
        %914 = vmatprep.mubr.f32.mxu0 0.0
        %915 = vmatmul.mubr.f32.gmra.mxu0 %v677
        %v916 = vpop.f32.mrf.mxu0
        %v917 = vadd.f32 0.0, %v916
        %v918 = vpop.f32.mrf.mxu0
        %919 = vmatprep.mubr.f32.mxu0 0.0
        %920 = vmatmul.mubr.f32.gmra.mxu0 %v680
        %v921 = vpop.f32.mrf.mxu0
        %v922 = vadd.f32 0.0, %v921
        %v923 = vpop.f32.mrf.mxu0
        %924 = vmatprep.mubr.f32.mxu0 0.0
        %925 = vmatmul.mubr.f32.gmra.mxu0 %v683
        %v926 = vpop.f32.mrf.mxu0
        %v927 = vadd.f32 0.0, %v926
        %v928 = vpop.f32.mrf.mxu0
        %929 = vmatprep.mubr.f32.mxu0 0.0
        %930 = vmatmul.mubr.f32.gmra.mxu0 %v686
        %v931 = vpop.f32.mrf.mxu0
        %v932 = vadd.f32 0.0, %v931
        %v933 = vpop.f32.mrf.mxu0
        %934 = vmatprep.mubr.f32.mxu0 0.0
        %935 = vmatmul.mubr.f32.gmra.mxu0 %v689
        %v936 = vpop.f32.mrf.mxu0
        %v937 = vadd.f32 0.0, %v936
        %v938 = vpop.f32.mrf.mxu0
        %939 = vmatprep.mubr.f32.mxu0 0.0
        %940 = vmatmul.mubr.f32.gmra.mxu0 %v692
        %v941 = vpop.f32.mrf.mxu0
        %v942 = vadd.f32 0.0, %v941
        %v943 = vpop.f32.mrf.mxu0
        %944 = vmatprep.mubr.f32.mxu0 0.0
        %945 = vmatmul.mubr.f32.gmra.mxu0 %v695
        %v946 = vpop.f32.mrf.mxu0
        %v947 = vadd.f32 0.0, %v946
        %v948 = vpop.f32.mrf.mxu0
        %949 = vmatprep.mubr.f32.mxu0 0.0
        %950 = vmatmul.mubr.f32.gmra.mxu0 %v698
        %v951 = vpop.f32.mrf.mxu0
        %v952 = vadd.f32 0.0, %v951
        %v953 = vpop.f32.mrf.mxu0
        %954 = vmatprep.mubr.f32.mxu0 0.0
        %955 = vmatmul.mubr.f32.gmra.mxu0 %v701
        %v956 = vpop.f32.mrf.mxu0
        %v957 = vadd.f32 0.0, %v956
        %v958 = vpop.f32.mrf.mxu0
        %959 = vmatprep.mubr.f32.mxu0 0.0
        %960 = vmatmul.mubr.f32.gmra.mxu0 %v704
        %v961 = vpop.f32.mrf.mxu0
        %v962 = vadd.f32 0.0, %v961
        %v963 = vpop.f32.mrf.mxu0
        %964 = vmatprep.mubr.f32.mxu0 0.0
        %965 = vmatmul.mubr.f32.gmra.mxu0 %v707
        %v966 = vpop.f32.mrf.mxu0
        %v967 = vadd.f32 0.0, %v966
        %v968 = vpop.f32.mrf.mxu0
        %969 = vmatprep.mubr.f32.mxu0 0.0
        %970 = vmatmul.mubr.f32.gmra.mxu0 %v710
        %v971 = vpop.f32.mrf.mxu0
        %v972 = vadd.f32 0.0, %v971
        %v973 = vpop.f32.mrf.mxu0
        %974 = vmatprep.mubr.f32.mxu0 0.0
        %975 = vmatmul.mubr.f32.gmra.mxu0 %v713
        %v976 = vpop.f32.mrf.mxu0
        %v977 = vadd.f32 0.0, %v976
        %v978 = vpop.f32.mrf.mxu0
        %979 = vmatprep.mubr.f32.mxu0 0.0
        %980 = vmatmul.mubr.f32.gmra.mxu0 %v716
        %v981 = vpop.f32.mrf.mxu0
        %v982 = vadd.f32 0.0, %v981
        %v983 = vpop.f32.mrf.mxu0
        %984 = vmatprep.mubr.f32.mxu0 0.0
        %985 = vmatmul.mubr.f32.gmra.mxu0 %v719
        %v986 = vpop.f32.mrf.mxu0
        %v987 = vadd.f32 0.0, %v986
        %v988 = vpop.f32.mrf.mxu0
        %989 = vmatprep.mubr.f32.mxu0 0.0
        %990 = vmatmul.mubr.f32.gmra.mxu0 %v722
        %v991 = vpop.f32.mrf.mxu0
        %v992 = vadd.f32 0.0, %v991
        %v993 = vpop.f32.mrf.mxu0
        %994 = vmatprep.mubr.f32.mxu0 0.0
        %995 = vmatmul.mubr.f32.gmra.mxu0 %v725
        %v996 = vpop.f32.mrf.mxu0
        %v997 = vadd.f32 0.0, %v996
        %v998 = vpop.f32.mrf.mxu0
        %999 = vmatprep.mubr.f32.mxu0 0.0
        %1000 = vmatmul.mubr.f32.gmra.mxu0 %v728
        %v1001 = vpop.f32.mrf.mxu0
        %v1002 = vadd.f32 0.0, %v1001
        %v1003 = vpop.f32.mrf.mxu0
        %1004 = vmatprep.mubr.f32.mxu0 0.0
        %1005 = vmatmul.mubr.f32.gmra.mxu0 %v731
        %v1006 = vpop.f32.mrf.mxu0
        %v1007 = vadd.f32 0.0, %v1006
        %v1008 = vpop.f32.mrf.mxu0
        %1009 = vmatprep.mubr.f32.mxu0 0.0
        %1010 = vmatmul.mubr.f32.gmra.mxu0 %v734
        %v1011 = vpop.f32.mrf.mxu0
        %v1012 = vadd.f32 0.0, %v1011
        %v1013 = vpop.f32.mrf.mxu0
        %1014 = vmatprep.mubr.f32.mxu0 0.0
        %1015 = vmatmul.mubr.f32.gmra.mxu0 %v737
        %v1016 = vpop.f32.mrf.mxu0
        %v1017 = vadd.f32 0.0, %v1016
        %v1018 = vpop.f32.mrf.mxu0
        %1019 = vmatprep.mubr.f32.mxu0 0.0
        %1020 = vmatmul.mubr.f32.gmra.mxu0 %v740
        %v1021 = vpop.f32.mrf.mxu0
        %v1022 = vadd.f32 0.0, %v1021
        %v1023 = vpop.f32.mrf.mxu0
        %1024 = vmatprep.mubr.f32.mxu0 0.0
        %1025 = vmatmul.mubr.f32.gmra.mxu0 %v743
        %v1026 = vpop.f32.mrf.mxu0
        %v1027 = vadd.f32 0.0, %v1026
        %v1028 = vpop.f32.mrf.mxu0
        %1029 = vmatprep.mubr.f32.mxu0 0.0
        %1030 = vmatmul.mubr.f32.gmra.mxu0 %v746
        %v1031 = vpop.f32.mrf.mxu0
        %v1032 = vadd.f32 0.0, %v1031
        %v1033 = vpop.f32.mrf.mxu0
        %1034 = vmatprep.mubr.f32.mxu0 0.0
        %1035 = vmatmul.mubr.f32.gmra.mxu0 %v749
        %v1036 = vpop.f32.mrf.mxu0
        %v1037 = vadd.f32 0.0, %v1036
        %v1038 = vpop.f32.mrf.mxu0
        %1039 = vmatprep.mubr.f32.mxu0 0.0
        %1040 = vmatmul.mubr.f32.gmra.mxu0 %v752
        %v1041 = vpop.f32.mrf.mxu0
        %v1042 = vadd.f32 0.0, %v1041
        %v1043 = vpop.f32.mrf.mxu0
        %1044 = vmatprep.mubr.f32.mxu0 0.0
        %1045 = vmatmul.mubr.f32.gmra.mxu0 %v755
        %v1046 = vpop.f32.mrf.mxu0
        %v1047 = vadd.f32 0.0, %v1046
        %v1048 = vpop.f32.mrf.mxu0
        %1049 = vmatprep.mubr.f32.mxu0 0.0
        %1050 = vmatmul.mubr.f32.gmra.mxu0 %v758
        %v1051 = vpop.f32.mrf.mxu0
        %v1052 = vadd.f32 0.0, %v1051
        %v1053 = vpop.f32.mrf.mxu0
        %1054 = vmatprep.mubr.f32.mxu0 0.0
        %1055 = vmatmul.mubr.f32.gmra.mxu0 %v761
        %v1056 = vpop.f32.mrf.mxu0
        %v1057 = vadd.f32 0.0, %v1056
        %v1058 = vpop.f32.mrf.mxu0
        %1059 = vmatprep.mubr.f32.mxu0 0.0
        %1060 = vmatmul.mubr.f32.gmra.mxu0 %v764
        %v1061 = vpop.f32.mrf.mxu0
        %v1062 = vadd.f32 0.0, %v1061
        %v1063 = vpop.f32.mrf.mxu0
        %1064 = vmatprep.mubr.f32.mxu0 0.0
        %1065 = vmatmul.mubr.f32.gmra.mxu0 %v767
        %v1066 = vpop.f32.mrf.mxu0
        %v1067 = vadd.f32 0.0, %v1066
        %v1068 = vpop.f32.mrf.mxu0
        %1069 = vmatprep.mubr.f32.mxu0 0.0
        %1070 = vmatmul.mubr.f32.gmra.mxu0 %v770
        %v1071 = vpop.f32.mrf.mxu0
        %v1072 = vadd.f32 0.0, %v1071
        %v1073 = vpop.f32.mrf.mxu0
        %1074 = vmatprep.mubr.f32.mxu0 0.0
        %1075 = vmatmul.mubr.f32.gmra.mxu0 %v773
        %v1076 = vpop.f32.mrf.mxu0
        %v1077 = vadd.f32 0.0, %v1076
        %v1078 = vpop.f32.mrf.mxu0
        %1079 = vdwg.mxu0
        %v1080 = vmul.f32 %v842, %v842
        %v1081 = vmul.f32 %v847, %v847
        %v1082 = vmul.f32 %v852, %v852
        %v1083 = vmul.f32 %v857, %v857
        %v1084 = vmul.f32 %v862, %v862
        %v1085 = vmul.f32 %v867, %v867
        %v1086 = vmul.f32 %v872, %v872
        %v1087 = vmul.f32 %v877, %v877
        %v1088 = vmul.f32 %v882, %v882
        %v1089 = vmul.f32 %v887, %v887
        %v1090 = vmul.f32 %v892, %v892
        %v1091 = vmul.f32 %v897, %v897
        %v1092 = vmul.f32 %v902, %v902
        %v1093 = vmul.f32 %v907, %v907
        %v1094 = vmul.f32 %v912, %v912
        %v1095 = vmul.f32 %v917, %v917
        %v1096 = vmul.f32 %v922, %v922
        %v1097 = vmul.f32 %v927, %v927
        %v1098 = vmul.f32 %v932, %v932
        %v1099 = vmul.f32 %v937, %v937
        %v1100 = vmul.f32 %v942, %v942
        %v1101 = vmul.f32 %v947, %v947
        %v1102 = vmul.f32 %v952, %v952
        %v1103 = vmul.f32 %v957, %v957
        %v1104 = vmul.f32 %v962, %v962
        %v1105 = vmul.f32 %v967, %v967
        %v1106 = vmul.f32 %v972, %v972
        %v1107 = vmul.f32 %v977, %v977
        %v1108 = vmul.f32 %v982, %v982
        %v1109 = vmul.f32 %v987, %v987
        %v1110 = vmul.f32 %v992, %v992
        %v1111 = vmul.f32 %v997, %v997
        %v1112 = vmul.f32 %v1002, %v1002
        %v1113 = vmul.f32 %v1007, %v1007
        %v1114 = vmul.f32 %v1012, %v1012
        %v1115 = vmul.f32 %v1017, %v1017
        %v1116 = vmul.f32 %v1022, %v1022
        %v1117 = vmul.f32 %v1027, %v1027
        %v1118 = vmul.f32 %v1032, %v1032
        %v1119 = vmul.f32 %v1037, %v1037
        %v1120 = vmul.f32 %v1042, %v1042
        %v1121 = vmul.f32 %v1047, %v1047
        %v1122 = vmul.f32 %v1052, %v1052
        %v1123 = vmul.f32 %v1057, %v1057
        %v1124 = vmul.f32 %v1062, %v1062
        %v1125 = vmul.f32 %v1067, %v1067
        %v1126 = vmul.f32 %v1072, %v1072
        %v1127 = vmul.f32 %v1077, %v1077
        %vm1128 = vcmask 523520
        %v1129 = vsel %vm1128, %v1080, 0.0
        %v1130 = vsel %vm1128, %v1096, 0.0
        %v1131 = vadd.f32 %v1129, %v1130
        %v1132 = vsel %vm1128, %v1112, 0.0
        %v1133 = vadd.f32 %v1131, %v1132
        %v1134 = vsel %vm1128, %v1081, 0.0
        %v1135 = vsel %vm1128, %v1097, 0.0
        %v1136 = vadd.f32 %v1134, %v1135
        %v1137 = vsel %vm1128, %v1113, 0.0
        %v1138 = vadd.f32 %v1136, %v1137
        %v1139 = vsel %vm1128, %v1082, 0.0
        %v1140 = vsel %vm1128, %v1098, 0.0
        %v1141 = vadd.f32 %v1139, %v1140
        %v1142 = vsel %vm1128, %v1114, 0.0
        %v1143 = vadd.f32 %v1141, %v1142
        %v1144 = vsel %vm1128, %v1083, 0.0
        %v1145 = vsel %vm1128, %v1099, 0.0
        %v1146 = vadd.f32 %v1144, %v1145
        %v1147 = vsel %vm1128, %v1115, 0.0
        %v1148 = vadd.f32 %v1146, %v1147
        %v1149 = vsel %vm1128, %v1084, 0.0
        %v1150 = vsel %vm1128, %v1100, 0.0
        %v1151 = vadd.f32 %v1149, %v1150
        %v1152 = vsel %vm1128, %v1116, 0.0
        %v1153 = vadd.f32 %v1151, %v1152
        %v1154 = vsel %vm1128, %v1085, 0.0
        %v1155 = vsel %vm1128, %v1101, 0.0
        %v1156 = vadd.f32 %v1154, %v1155
        %v1157 = vsel %vm1128, %v1117, 0.0
        %v1158 = vadd.f32 %v1156, %v1157
        %v1159 = vsel %vm1128, %v1086, 0.0
        %v1160 = vsel %vm1128, %v1102, 0.0
        %v1161 = vadd.f32 %v1159, %v1160
        %v1162 = vsel %vm1128, %v1118, 0.0
        %v1163 = vadd.f32 %v1161, %v1162
        %v1164 = vsel %vm1128, %v1087, 0.0
        %v1165 = vsel %vm1128, %v1103, 0.0
        %v1166 = vadd.f32 %v1164, %v1165
        %v1167 = vsel %vm1128, %v1119, 0.0
        %v1168 = vadd.f32 %v1166, %v1167
        %v1169 = vsel %vm1128, %v1088, 0.0
        %v1170 = vsel %vm1128, %v1104, 0.0
        %v1171 = vadd.f32 %v1169, %v1170
        %v1172 = vsel %vm1128, %v1120, 0.0
        %v1173 = vadd.f32 %v1171, %v1172
        %v1174 = vsel %vm1128, %v1089, 0.0
        %v1175 = vsel %vm1128, %v1105, 0.0
        %v1176 = vadd.f32 %v1174, %v1175
        %v1177 = vsel %vm1128, %v1121, 0.0
        %v1178 = vadd.f32 %v1176, %v1177
        %v1179 = vsel %vm1128, %v1090, 0.0
        %v1180 = vsel %vm1128, %v1106, 0.0
        %v1181 = vadd.f32 %v1179, %v1180
        %v1182 = vsel %vm1128, %v1122, 0.0
        %v1183 = vadd.f32 %v1181, %v1182
        %v1184 = vsel %vm1128, %v1091, 0.0
        %v1185 = vsel %vm1128, %v1107, 0.0
        %v1186 = vadd.f32 %v1184, %v1185
        %v1187 = vsel %vm1128, %v1123, 0.0
        %v1188 = vadd.f32 %v1186, %v1187
        %v1189 = vsel %vm1128, %v1092, 0.0
        %v1190 = vsel %vm1128, %v1108, 0.0
        %v1191 = vadd.f32 %v1189, %v1190
        %v1192 = vsel %vm1128, %v1124, 0.0
        %v1193 = vadd.f32 %v1191, %v1192
        %v1194 = vsel %vm1128, %v1093, 0.0
        %v1195 = vsel %vm1128, %v1109, 0.0
        %v1196 = vadd.f32 %v1194, %v1195
        %v1197 = vsel %vm1128, %v1125, 0.0
        %v1198 = vadd.f32 %v1196, %v1197
        %v1199 = vsel %vm1128, %v1094, 0.0
        %v1200 = vsel %vm1128, %v1110, 0.0
        %v1201 = vadd.f32 %v1199, %v1200
        %v1202 = vsel %vm1128, %v1126, 0.0
        %v1203 = vadd.f32 %v1201, %v1202
        %v1204 = vsel %vm1128, %v1095, 0.0
        %v1205 = vsel %vm1128, %v1111, 0.0
        %v1206 = vadd.f32 %v1204, %v1205
        %v1207 = vsel %vm1128, %v1127, 0.0
        %v1208 = vadd.f32 %v1206, %v1207
        %v1209 = vrsqrt.pop %v1133
        %v1210 = vmul.f32 %v1133, %v1209
        %vm1211 = vcmp.eq.f32.partialorder %v1133, inf
        %v1212 = vsel %vm1211, %v1133, %v1210
        %vm1213 = vcmp.eq.f32.partialorder %v1133, 0.0
        %v1214 = vand.u32 %v1133, 2147483648
        %v1215 = vsel %vm1213, %v1214, %v1212
        %v1216 = vrsqrt.pop %v1138
        %v1217 = vmul.f32 %v1138, %v1216
        %vm1218 = vcmp.eq.f32.partialorder %v1138, inf
        %v1219 = vsel %vm1218, %v1138, %v1217
        %vm1220 = vcmp.eq.f32.partialorder %v1138, 0.0
        %v1221 = vand.u32 %v1138, 2147483648
        %v1222 = vsel %vm1220, %v1221, %v1219
        %v1223 = vrsqrt.pop %v1143
        %v1224 = vmul.f32 %v1143, %v1223
        %vm1225 = vcmp.eq.f32.partialorder %v1143, inf
        %v1226 = vsel %vm1225, %v1143, %v1224
        %vm1227 = vcmp.eq.f32.partialorder %v1143, 0.0
        %v1228 = vand.u32 %v1143, 2147483648
        %v1229 = vsel %vm1227, %v1228, %v1226
        %v1230 = vrsqrt.pop %v1148
        %v1231 = vmul.f32 %v1148, %v1230
        %vm1232 = vcmp.eq.f32.partialorder %v1148, inf
        %v1233 = vsel %vm1232, %v1148, %v1231
        %vm1234 = vcmp.eq.f32.partialorder %v1148, 0.0
        %v1235 = vand.u32 %v1148, 2147483648
        %v1236 = vsel %vm1234, %v1235, %v1233
        %v1237 = vrsqrt.pop %v1153
        %v1238 = vmul.f32 %v1153, %v1237
        %vm1239 = vcmp.eq.f32.partialorder %v1153, inf
        %v1240 = vsel %vm1239, %v1153, %v1238
        %vm1241 = vcmp.eq.f32.partialorder %v1153, 0.0
        %v1242 = vand.u32 %v1153, 2147483648
        %v1243 = vsel %vm1241, %v1242, %v1240
        %v1244 = vrsqrt.pop %v1158
        %v1245 = vmul.f32 %v1158, %v1244
        %vm1246 = vcmp.eq.f32.partialorder %v1158, inf
        %v1247 = vsel %vm1246, %v1158, %v1245
        %vm1248 = vcmp.eq.f32.partialorder %v1158, 0.0
        %v1249 = vand.u32 %v1158, 2147483648
        %v1250 = vsel %vm1248, %v1249, %v1247
        %v1251 = vrsqrt.pop %v1163
        %v1252 = vmul.f32 %v1163, %v1251
        %vm1253 = vcmp.eq.f32.partialorder %v1163, inf
        %v1254 = vsel %vm1253, %v1163, %v1252
        %vm1255 = vcmp.eq.f32.partialorder %v1163, 0.0
        %v1256 = vand.u32 %v1163, 2147483648
        %v1257 = vsel %vm1255, %v1256, %v1254
        %v1258 = vrsqrt.pop %v1168
        %v1259 = vmul.f32 %v1168, %v1258
        %vm1260 = vcmp.eq.f32.partialorder %v1168, inf
        %v1261 = vsel %vm1260, %v1168, %v1259
        %vm1262 = vcmp.eq.f32.partialorder %v1168, 0.0
        %v1263 = vand.u32 %v1168, 2147483648
        %v1264 = vsel %vm1262, %v1263, %v1261
        %v1265 = vrsqrt.pop %v1173
        %v1266 = vmul.f32 %v1173, %v1265
        %vm1267 = vcmp.eq.f32.partialorder %v1173, inf
        %v1268 = vsel %vm1267, %v1173, %v1266
        %vm1269 = vcmp.eq.f32.partialorder %v1173, 0.0
        %v1270 = vand.u32 %v1173, 2147483648
        %v1271 = vsel %vm1269, %v1270, %v1268
        %v1272 = vrsqrt.pop %v1178
        %v1273 = vmul.f32 %v1178, %v1272
        %vm1274 = vcmp.eq.f32.partialorder %v1178, inf
        %v1275 = vsel %vm1274, %v1178, %v1273
        %vm1276 = vcmp.eq.f32.partialorder %v1178, 0.0
        %v1277 = vand.u32 %v1178, 2147483648
        %v1278 = vsel %vm1276, %v1277, %v1275
        %v1279 = vrsqrt.pop %v1183
        %v1280 = vmul.f32 %v1183, %v1279
        %vm1281 = vcmp.eq.f32.partialorder %v1183, inf
        %v1282 = vsel %vm1281, %v1183, %v1280
        %vm1283 = vcmp.eq.f32.partialorder %v1183, 0.0
        %v1284 = vand.u32 %v1183, 2147483648
        %v1285 = vsel %vm1283, %v1284, %v1282
        %v1286 = vrsqrt.pop %v1188
        %v1287 = vmul.f32 %v1188, %v1286
        %vm1288 = vcmp.eq.f32.partialorder %v1188, inf
        %v1289 = vsel %vm1288, %v1188, %v1287
        %vm1290 = vcmp.eq.f32.partialorder %v1188, 0.0
        %v1291 = vand.u32 %v1188, 2147483648
        %v1292 = vsel %vm1290, %v1291, %v1289
        %v1293 = vrsqrt.pop %v1193
        %v1294 = vmul.f32 %v1193, %v1293
        %vm1295 = vcmp.eq.f32.partialorder %v1193, inf
        %v1296 = vsel %vm1295, %v1193, %v1294
        %vm1297 = vcmp.eq.f32.partialorder %v1193, 0.0
        %v1298 = vand.u32 %v1193, 2147483648
        %v1299 = vsel %vm1297, %v1298, %v1296
        %v1300 = vrsqrt.pop %v1198
        %v1301 = vmul.f32 %v1198, %v1300
        %vm1302 = vcmp.eq.f32.partialorder %v1198, inf
        %v1303 = vsel %vm1302, %v1198, %v1301
        %vm1304 = vcmp.eq.f32.partialorder %v1198, 0.0
        %v1305 = vand.u32 %v1198, 2147483648
        %v1306 = vsel %vm1304, %v1305, %v1303
        %v1307 = vrsqrt.pop %v1203
        %v1308 = vmul.f32 %v1203, %v1307
        %vm1309 = vcmp.eq.f32.partialorder %v1203, inf
        %v1310 = vsel %vm1309, %v1203, %v1308
        %vm1311 = vcmp.eq.f32.partialorder %v1203, 0.0
        %v1312 = vand.u32 %v1203, 2147483648
        %v1313 = vsel %vm1311, %v1312, %v1310
        %v1314 = vrsqrt.pop %v1208
        %v1315 = vmul.f32 %v1208, %v1314
        %vm1316 = vcmp.eq.f32.partialorder %v1208, inf
        %v1317 = vsel %vm1316, %v1208, %v1315
        %vm1318 = vcmp.eq.f32.partialorder %v1208, 0.0
        %v1319 = vand.u32 %v1208, 2147483648
        %v1320 = vsel %vm1318, %v1319, %v1317
        %v1321 = vsel %vm630, %v562, %v1215
        %v1322 = vsel %vm630, %v563, %v1222
        %v1323 = vsel %vm630, %v564, %v1229
        %v1324 = vsel %vm630, %v565, %v1236
        %v1325 = vsel %vm630, %v566, %v1243
        %v1326 = vsel %vm630, %v567, %v1250
        %v1327 = vsel %vm630, %v568, %v1257
        %v1328 = vsel %vm630, %v569, %v1264
        %v1329 = vsel %vm630, %v570, %v1271
        %v1330 = vsel %vm630, %v571, %v1278
        %v1331 = vsel %vm630, %v572, %v1285
        %v1332 = vsel %vm630, %v573, %v1292
        %v1333 = vsel %vm630, %v574, %v1299
        %v1334 = vsel %vm630, %v575, %v1306
        %v1335 = vsel %vm630, %v576, %v1313
        %v1336 = vsel %vm630, %v577, %v1320
        %v1337 = vld [vmem:[%s3] sm:$0xff]
        %v1338 = vld [vmem:[%s3 + $0x8] sm:$0xff]
        %v1339 = vld [vmem:[%s3 + $0x10] sm:$0xff]
        %v1340 = vld [vmem:[%s3 + $0x18] sm:$0xff]
        %v1341 = vld [vmem:[%s3 + $0x20] sm:$0xff]
        %v1342 = vld [vmem:[%s3 + $0x28] sm:$0xff]
        %v1343 = vld [vmem:[%s3 + $0x30] sm:$0xff]
        %v1344 = vld [vmem:[%s3 + $0x38] sm:$0xff]
        %v1345 = vld [vmem:[%s4] sm:$0x1]
        %v1347 = vlaneseq
        %v1348 = vshrl.u32 %v1347, 7
        %v1349 = vsub.s32 0, %v1348
        %v1350 = vrot.slane %v1345, %v1349
        %vm1352 = vcmask 523264
        %v1354 = vsel %vm1352, %v1321, 0
        %v1357 = vsel %vm1352, %v1322, 0
        %v1360 = vsel %vm1352, %v1323, 0
        %v1363 = vsel %vm1352, %v1324, 0
        %v1366 = vsel %vm1352, %v1325, 0
        %v1369 = vsel %vm1352, %v1326, 0
        %v1372 = vsel %vm1352, %v1327, 0
        %v1375 = vsel %vm1352, %v1328, 0
        %v1378 = vsel %vm1352, %v1329, 0
        %v1381 = vsel %vm1352, %v1330, 0
        %v1384 = vsel %vm1352, %v1331, 0
        %v1387 = vsel %vm1352, %v1332, 0
        %v1390 = vsel %vm1352, %v1333, 0
        %v1393 = vsel %vm1352, %v1334, 0
        %v1396 = vsel %vm1352, %v1335, 0
        %v1399 = vsel %vm1352, %v1336, 0
        %1401 = vmatprep.subr.mxu0 0.0
        %1402 = vmatpush1.msra.mxu0 0.0
        %1403 = vmatprep.subr.mxu0 0.0
        %1404 = vmatpush1.msra.mxu0 0.0
        %1405 = vmatprep.subr.mxu0 0.0
        %1406 = vmatpush1.msra.mxu0 0.0
        %1407 = vmatprep.subr.mxu0 0.0
        %1408 = vmatpush1.msra.mxu0 0.0
        %1409 = vmatprep.subr.mxu0 0.0
        %1410 = vmatpush1.msra.mxu0 0.0
        %1411 = vmatprep.subr.mxu0 0.0
        %1412 = vmatpush1.msra.mxu0 0.0
        %1413 = vmatprep.subr.mxu0 0.0
        %1414 = vmatpush1.msra.mxu0 0.0
        %1415 = vmatprep.subr.mxu0 0.0
        %1416 = vmatpush1.msra.mxu0 0.0
        %1417 = vmatprep.subr.mxu0 0.0
        %1418 = vmatpush1.msra.mxu0 %v1344
        %1419 = vmatprep.subr.mxu0 0.0
        %1420 = vmatpush1.msra.mxu0 %v1343
        %1421 = vmatprep.subr.mxu0 0.0
        %1422 = vmatpush1.msra.mxu0 %v1342
        %1423 = vmatprep.subr.mxu0 0.0
        %1424 = vmatpush1.msra.mxu0 %v1341
        %1425 = vmatprep.subr.mxu0 0.0
        %1426 = vmatpush1.msra.mxu0 %v1340
        %1427 = vmatprep.subr.mxu0 0.0
        %1428 = vmatpush1.msra.mxu0 %v1339
        %1429 = vmatprep.subr.mxu0 0.0
        %1430 = vmatpush1.msra.mxu0 %v1338
        %1431 = vmatprep.subr.mxu0 0.0
        %1432 = vmatpush1.msra.mxu0 %v1337
        %1433 = vmatprep.subr.mxu0 0.0
        %1434 = vmatpush2.msra.mxu0 0.0
        %1435 = vmatprep.subr.mxu0 0.0
        %1436 = vmatpush2.msra.mxu0 0.0
        %1437 = vmatprep.subr.mxu0 0.0
        %1438 = vmatpush2.msra.mxu0 0.0
        %1439 = vmatprep.subr.mxu0 0.0
        %1440 = vmatpush2.msra.mxu0 0.0
        %1441 = vmatprep.subr.mxu0 0.0
        %1442 = vmatpush2.msra.mxu0 0.0
        %1443 = vmatprep.subr.mxu0 0.0
        %1444 = vmatpush2.msra.mxu0 0.0
        %1445 = vmatprep.subr.mxu0 0.0
        %1446 = vmatpush2.msra.mxu0 0.0
        %1447 = vmatprep.subr.mxu0 0.0
        %1448 = vmatpush2.msra.mxu0 0.0
        %1449 = vmatprep.subr.mxu0 0.0
        %1450 = vmatpush2.msra.mxu0 0.0
        %1451 = vmatprep.subr.mxu0 0.0
        %1452 = vmatpush2.msra.mxu0 0.0
        %1453 = vmatprep.subr.mxu0 0.0
        %1454 = vmatpush2.msra.mxu0 0.0
        %1455 = vmatprep.subr.mxu0 0.0
        %1456 = vmatpush2.msra.mxu0 0.0
        %1457 = vmatprep.subr.mxu0 0.0
        %1458 = vmatpush2.msra.mxu0 0.0
        %1459 = vmatprep.subr.mxu0 0.0
        %1460 = vmatpush2.msra.mxu0 0.0
        %1461 = vmatprep.subr.mxu0 0.0
        %1462 = vmatpush2.msra.mxu0 0.0
        %1463 = vmatprep.subr.mxu0 0.0
        %1464 = vmatpush2.msra.mxu0 0.0
        %1465 = vmatprep.mubr.f32.mxu0 0.0
        %1466 = vmatmul.mubr.f32.gmra.mxu0 %v1354
        %v1467 = vpop.f32.mrf.mxu0
        %v1468 = vadd.f32 %v1350, %v1467
        %v1469 = vpop.f32.mrf.mxu0
        %1470 = vmatprep.mubr.f32.mxu0 0.0
        %1471 = vmatmul.mubr.f32.gmra.mxu0 %v1357
        %v1472 = vpop.f32.mrf.mxu0
        %v1473 = vadd.f32 %v1350, %v1472
        %v1474 = vpop.f32.mrf.mxu0
        %1475 = vmatprep.mubr.f32.mxu0 0.0
        %1476 = vmatmul.mubr.f32.gmra.mxu0 %v1360
        %v1477 = vpop.f32.mrf.mxu0
        %v1478 = vadd.f32 %v1350, %v1477
        %v1479 = vpop.f32.mrf.mxu0
        %1480 = vmatprep.mubr.f32.mxu0 0.0
        %1481 = vmatmul.mubr.f32.gmra.mxu0 %v1363
        %v1482 = vpop.f32.mrf.mxu0
        %v1483 = vadd.f32 %v1350, %v1482
        %v1484 = vpop.f32.mrf.mxu0
        %1485 = vmatprep.mubr.f32.mxu0 0.0
        %1486 = vmatmul.mubr.f32.gmra.mxu0 %v1366
        %v1487 = vpop.f32.mrf.mxu0
        %v1488 = vadd.f32 %v1350, %v1487
        %v1489 = vpop.f32.mrf.mxu0
        %1490 = vmatprep.mubr.f32.mxu0 0.0
        %1491 = vmatmul.mubr.f32.gmra.mxu0 %v1369
        %v1492 = vpop.f32.mrf.mxu0
        %v1493 = vadd.f32 %v1350, %v1492
        %v1494 = vpop.f32.mrf.mxu0
        %1495 = vmatprep.mubr.f32.mxu0 0.0
        %1496 = vmatmul.mubr.f32.gmra.mxu0 %v1372
        %v1497 = vpop.f32.mrf.mxu0
        %v1498 = vadd.f32 %v1350, %v1497
        %v1499 = vpop.f32.mrf.mxu0
        %1500 = vmatprep.mubr.f32.mxu0 0.0
        %1501 = vmatmul.mubr.f32.gmra.mxu0 %v1375
        %v1502 = vpop.f32.mrf.mxu0
        %v1503 = vadd.f32 %v1350, %v1502
        %v1504 = vpop.f32.mrf.mxu0
        %1505 = vmatprep.mubr.f32.mxu0 0.0
        %1506 = vmatmul.mubr.f32.gmra.mxu0 %v1378
        %v1507 = vpop.f32.mrf.mxu0
        %v1508 = vadd.f32 %v1350, %v1507
        %v1509 = vpop.f32.mrf.mxu0
        %1510 = vmatprep.mubr.f32.mxu0 0.0
        %1511 = vmatmul.mubr.f32.gmra.mxu0 %v1381
        %v1512 = vpop.f32.mrf.mxu0
        %v1513 = vadd.f32 %v1350, %v1512
        %v1514 = vpop.f32.mrf.mxu0
        %1515 = vmatprep.mubr.f32.mxu0 0.0
        %1516 = vmatmul.mubr.f32.gmra.mxu0 %v1384
        %v1517 = vpop.f32.mrf.mxu0
        %v1518 = vadd.f32 %v1350, %v1517
        %v1519 = vpop.f32.mrf.mxu0
        %1520 = vmatprep.mubr.f32.mxu0 0.0
        %1521 = vmatmul.mubr.f32.gmra.mxu0 %v1387
        %v1522 = vpop.f32.mrf.mxu0
        %v1523 = vadd.f32 %v1350, %v1522
        %v1524 = vpop.f32.mrf.mxu0
        %1525 = vmatprep.mubr.f32.mxu0 0.0
        %1526 = vmatmul.mubr.f32.gmra.mxu0 %v1390
        %v1527 = vpop.f32.mrf.mxu0
        %v1528 = vadd.f32 %v1350, %v1527
        %v1529 = vpop.f32.mrf.mxu0
        %1530 = vmatprep.mubr.f32.mxu0 0.0
        %1531 = vmatmul.mubr.f32.gmra.mxu0 %v1393
        %v1532 = vpop.f32.mrf.mxu0
        %v1533 = vadd.f32 %v1350, %v1532
        %v1534 = vpop.f32.mrf.mxu0
        %1535 = vmatprep.mubr.f32.mxu0 0.0
        %1536 = vmatmul.mubr.f32.gmra.mxu0 %v1396
        %v1537 = vpop.f32.mrf.mxu0
        %v1538 = vadd.f32 %v1350, %v1537
        %v1539 = vpop.f32.mrf.mxu0
        %1540 = vmatprep.mubr.f32.mxu0 0.0
        %1541 = vmatmul.mubr.f32.gmra.mxu0 %v1399
        %v1542 = vpop.f32.mrf.mxu0
        %v1543 = vadd.f32 %v1350, %v1542
        %v1544 = vpop.f32.mrf.mxu0
        %1545 = vdwg.mxu0
        %v1546 = vxor.u32 %v1468, 2147483648
        %v1547 = vxor.u32 %v1473, 2147483648
        %v1548 = vxor.u32 %v1478, 2147483648
        %v1549 = vxor.u32 %v1483, 2147483648
        %v1550 = vxor.u32 %v1488, 2147483648
        %v1551 = vxor.u32 %v1493, 2147483648
        %v1552 = vxor.u32 %v1498, 2147483648
        %v1553 = vxor.u32 %v1503, 2147483648
        %v1554 = vxor.u32 %v1508, 2147483648
        %v1555 = vxor.u32 %v1513, 2147483648
        %v1556 = vxor.u32 %v1518, 2147483648
        %v1557 = vxor.u32 %v1523, 2147483648
        %v1558 = vxor.u32 %v1528, 2147483648
        %v1559 = vxor.u32 %v1533, 2147483648
        %v1560 = vxor.u32 %v1538, 2147483648
        %v1561 = vxor.u32 %v1543, 2147483648
        %v1562 = vmul.f32 %v1546, 1.442695
        %v1563 = vpow.pop %v1562
        %v1564 = vmul.f32 %v1547, 1.442695
        %v1565 = vpow.pop %v1564
        %v1566 = vmul.f32 %v1548, 1.442695
        %v1567 = vpow.pop %v1566
        %v1568 = vmul.f32 %v1549, 1.442695
        %v1569 = vpow.pop %v1568
        %v1570 = vmul.f32 %v1550, 1.442695
        %v1571 = vpow.pop %v1570
        %v1572 = vmul.f32 %v1551, 1.442695
        %v1573 = vpow.pop %v1572
        %v1574 = vmul.f32 %v1552, 1.442695
        %v1575 = vpow.pop %v1574
        %v1576 = vmul.f32 %v1553, 1.442695
        %v1577 = vpow.pop %v1576
        %v1578 = vmul.f32 %v1554, 1.442695
        %v1579 = vpow.pop %v1578
        %v1580 = vmul.f32 %v1555, 1.442695
        %v1581 = vpow.pop %v1580
        %v1582 = vmul.f32 %v1556, 1.442695
        %v1583 = vpow.pop %v1582
        %v1584 = vmul.f32 %v1557, 1.442695
        %v1585 = vpow.pop %v1584
        %v1586 = vmul.f32 %v1558, 1.442695
        %v1587 = vpow.pop %v1586
        %v1588 = vmul.f32 %v1559, 1.442695
        %v1589 = vpow.pop %v1588
        %v1590 = vmul.f32 %v1560, 1.442695
        %v1591 = vpow.pop %v1590
        %v1592 = vmul.f32 %v1561, 1.442695
        %v1593 = vpow.pop %v1592
        %v1594 = vadd.f32 %v1563, 1.0
        %v1595 = vadd.f32 %v1565, 1.0
        %v1596 = vadd.f32 %v1567, 1.0
        %v1597 = vadd.f32 %v1569, 1.0
        %v1598 = vadd.f32 %v1571, 1.0
        %v1599 = vadd.f32 %v1573, 1.0
        %v1600 = vadd.f32 %v1575, 1.0
        %v1601 = vadd.f32 %v1577, 1.0
        %v1602 = vadd.f32 %v1579, 1.0
        %v1603 = vadd.f32 %v1581, 1.0
        %v1604 = vadd.f32 %v1583, 1.0
        %v1605 = vadd.f32 %v1585, 1.0
        %v1606 = vadd.f32 %v1587, 1.0
        %v1607 = vadd.f32 %v1589, 1.0
        %v1608 = vadd.f32 %v1591, 1.0
        %v1609 = vadd.f32 %v1593, 1.0
        %v1610 = vrcp.pop %v1594
        %v1611 = vmul.f32 1.0, %v1610
        %v1612 = vrcp.pop %v1595
        %v1613 = vmul.f32 1.0, %v1612
        %v1614 = vrcp.pop %v1596
        %v1615 = vmul.f32 1.0, %v1614
        %v1616 = vrcp.pop %v1597
        %v1617 = vmul.f32 1.0, %v1616
        %v1618 = vrcp.pop %v1598
        %v1619 = vmul.f32 1.0, %v1618
        %v1620 = vrcp.pop %v1599
        %v1621 = vmul.f32 1.0, %v1620
        %v1622 = vrcp.pop %v1600
        %v1623 = vmul.f32 1.0, %v1622
        %v1624 = vrcp.pop %v1601
        %v1625 = vmul.f32 1.0, %v1624
        %v1626 = vrcp.pop %v1602
        %v1627 = vmul.f32 1.0, %v1626
        %v1628 = vrcp.pop %v1603
        %v1629 = vmul.f32 1.0, %v1628
        %v1630 = vrcp.pop %v1604
        %v1631 = vmul.f32 1.0, %v1630
        %v1632 = vrcp.pop %v1605
        %v1633 = vmul.f32 1.0, %v1632
        %v1634 = vrcp.pop %v1606
        %v1635 = vmul.f32 1.0, %v1634
        %v1636 = vrcp.pop %v1607
        %v1637 = vmul.f32 1.0, %v1636
        %v1638 = vrcp.pop %v1608
        %v1639 = vmul.f32 1.0, %v1638
        %v1640 = vrcp.pop %v1609
        %v1641 = vmul.f32 1.0, %v1640
        %v1642 = vmul.f32 %v1468, %v1611
        %v1643 = vmul.f32 %v1473, %v1613
        %v1644 = vmul.f32 %v1478, %v1615
        %v1645 = vmul.f32 %v1483, %v1617
        %v1646 = vmul.f32 %v1488, %v1619
        %v1647 = vmul.f32 %v1493, %v1621
        %v1648 = vmul.f32 %v1498, %v1623
        %v1649 = vmul.f32 %v1503, %v1625
        %v1650 = vmul.f32 %v1508, %v1627
        %v1651 = vmul.f32 %v1513, %v1629
        %v1652 = vmul.f32 %v1518, %v1631
        %v1653 = vmul.f32 %v1523, %v1633
        %v1654 = vmul.f32 %v1528, %v1635
        %v1655 = vmul.f32 %v1533, %v1637
        %v1656 = vmul.f32 %v1538, %v1639
        %v1657 = vmul.f32 %v1543, %v1641
        %v1658 = vld [vmem:[%s5] sm:$0xff]
        %v1659 = vld [vmem:[%s5 + $0x8] sm:$0xff]
        %v1660 = vld [vmem:[%s5 + $0x10] sm:$0xff]
        %v1661 = vld [vmem:[%s5 + $0x18] sm:$0xff]
        %v1662 = vld [vmem:[%s6] sm:$0x1]
        %v1664 = vlaneseq
        %v1665 = vshrl.u32 %v1664, 7
        %v1666 = vsub.s32 0, %v1665
        %v1667 = vrot.slane %v1662, %v1666
        %v1670 = vsel %vm630, %v1642, 0
        %v1673 = vsel %vm630, %v1643, 0
        %v1676 = vsel %vm630, %v1644, 0
        %v1679 = vsel %vm630, %v1645, 0
        %v1682 = vsel %vm630, %v1646, 0
        %v1685 = vsel %vm630, %v1647, 0
        %v1688 = vsel %vm630, %v1648, 0
        %v1691 = vsel %vm630, %v1649, 0
        %v1694 = vsel %vm630, %v1650, 0
        %v1697 = vsel %vm630, %v1651, 0
        %v1700 = vsel %vm630, %v1652, 0
        %v1703 = vsel %vm630, %v1653, 0
        %v1706 = vsel %vm630, %v1654, 0
        %v1709 = vsel %vm630, %v1655, 0
        %v1712 = vsel %vm630, %v1656, 0
        %v1715 = vsel %vm630, %v1657, 0
        %1717 = vmatprep.subr.mxu0 0.0
        %1718 = vmatpush1.msra.mxu0 0.0
        %1719 = vmatprep.subr.mxu0 0.0
        %1720 = vmatpush1.msra.mxu0 0.0
        %1721 = vmatprep.subr.mxu0 0.0
        %1722 = vmatpush1.msra.mxu0 0.0
        %1723 = vmatprep.subr.mxu0 0.0
        %1724 = vmatpush1.msra.mxu0 0.0
        %1725 = vmatprep.subr.mxu0 0.0
        %1726 = vmatpush1.msra.mxu0 0.0
        %1727 = vmatprep.subr.mxu0 0.0
        %1728 = vmatpush1.msra.mxu0 0.0
        %1729 = vmatprep.subr.mxu0 0.0
        %1730 = vmatpush1.msra.mxu0 0.0
        %1731 = vmatprep.subr.mxu0 0.0
        %1732 = vmatpush1.msra.mxu0 0.0
        %1733 = vmatprep.subr.mxu0 0.0
        %1734 = vmatpush1.msra.mxu0 0.0
        %1735 = vmatprep.subr.mxu0 0.0
        %1736 = vmatpush1.msra.mxu0 0.0
        %1737 = vmatprep.subr.mxu0 0.0
        %1738 = vmatpush1.msra.mxu0 0.0
        %1739 = vmatprep.subr.mxu0 0.0
        %1740 = vmatpush1.msra.mxu0 0.0
        %1741 = vmatprep.subr.mxu0 0.0
        %1742 = vmatpush1.msra.mxu0 %v1661
        %1743 = vmatprep.subr.mxu0 0.0
        %1744 = vmatpush1.msra.mxu0 %v1660
        %1745 = vmatprep.subr.mxu0 0.0
        %1746 = vmatpush1.msra.mxu0 %v1659
        %1747 = vmatprep.subr.mxu0 0.0
        %1748 = vmatpush1.msra.mxu0 %v1658
        %1749 = vmatprep.subr.mxu0 0.0
        %1750 = vmatpush2.msra.mxu0 0.0
        %1751 = vmatprep.subr.mxu0 0.0
        %1752 = vmatpush2.msra.mxu0 0.0
        %1753 = vmatprep.subr.mxu0 0.0
        %1754 = vmatpush2.msra.mxu0 0.0
        %1755 = vmatprep.subr.mxu0 0.0
        %1756 = vmatpush2.msra.mxu0 0.0
        %1757 = vmatprep.subr.mxu0 0.0
        %1758 = vmatpush2.msra.mxu0 0.0
        %1759 = vmatprep.subr.mxu0 0.0
        %1760 = vmatpush2.msra.mxu0 0.0
        %1761 = vmatprep.subr.mxu0 0.0
        %1762 = vmatpush2.msra.mxu0 0.0
        %1763 = vmatprep.subr.mxu0 0.0
        %1764 = vmatpush2.msra.mxu0 0.0
        %1765 = vmatprep.subr.mxu0 0.0
        %1766 = vmatpush2.msra.mxu0 0.0
        %1767 = vmatprep.subr.mxu0 0.0
        %1768 = vmatpush2.msra.mxu0 0.0
        %1769 = vmatprep.subr.mxu0 0.0
        %1770 = vmatpush2.msra.mxu0 0.0
        %1771 = vmatprep.subr.mxu0 0.0
        %1772 = vmatpush2.msra.mxu0 0.0
        %1773 = vmatprep.subr.mxu0 0.0
        %1774 = vmatpush2.msra.mxu0 0.0
        %1775 = vmatprep.subr.mxu0 0.0
        %1776 = vmatpush2.msra.mxu0 0.0
        %1777 = vmatprep.subr.mxu0 0.0
        %1778 = vmatpush2.msra.mxu0 0.0
        %1779 = vmatprep.subr.mxu0 0.0
        %1780 = vmatpush2.msra.mxu0 0.0
        %1781 = vmatprep.mubr.f32.mxu0 0.0
        %1782 = vmatmul.mubr.f32.gmra.mxu0 %v1670
        %v1783 = vpop.f32.mrf.mxu0
        %v1784 = vadd.f32 %v1667, %v1783
        %v1785 = vpop.f32.mrf.mxu0
        %1786 = vmatprep.mubr.f32.mxu0 0.0
        %1787 = vmatmul.mubr.f32.gmra.mxu0 %v1673
        %v1788 = vpop.f32.mrf.mxu0
        %v1789 = vadd.f32 %v1667, %v1788
        %v1790 = vpop.f32.mrf.mxu0
        %1791 = vmatprep.mubr.f32.mxu0 0.0
        %1792 = vmatmul.mubr.f32.gmra.mxu0 %v1676
        %v1793 = vpop.f32.mrf.mxu0
        %v1794 = vadd.f32 %v1667, %v1793
        %v1795 = vpop.f32.mrf.mxu0
        %1796 = vmatprep.mubr.f32.mxu0 0.0
        %1797 = vmatmul.mubr.f32.gmra.mxu0 %v1679
        %v1798 = vpop.f32.mrf.mxu0
        %v1799 = vadd.f32 %v1667, %v1798
        %v1800 = vpop.f32.mrf.mxu0
        %1801 = vmatprep.mubr.f32.mxu0 0.0
        %1802 = vmatmul.mubr.f32.gmra.mxu0 %v1682
        %v1803 = vpop.f32.mrf.mxu0
        %v1804 = vadd.f32 %v1667, %v1803
        %v1805 = vpop.f32.mrf.mxu0
        %1806 = vmatprep.mubr.f32.mxu0 0.0
        %1807 = vmatmul.mubr.f32.gmra.mxu0 %v1685
        %v1808 = vpop.f32.mrf.mxu0
        %v1809 = vadd.f32 %v1667, %v1808
        %v1810 = vpop.f32.mrf.mxu0
        %1811 = vmatprep.mubr.f32.mxu0 0.0
        %1812 = vmatmul.mubr.f32.gmra.mxu0 %v1688
        %v1813 = vpop.f32.mrf.mxu0
        %v1814 = vadd.f32 %v1667, %v1813
        %v1815 = vpop.f32.mrf.mxu0
        %1816 = vmatprep.mubr.f32.mxu0 0.0
        %1817 = vmatmul.mubr.f32.gmra.mxu0 %v1691
        %v1818 = vpop.f32.mrf.mxu0
        %v1819 = vadd.f32 %v1667, %v1818
        %v1820 = vpop.f32.mrf.mxu0
        %1821 = vmatprep.mubr.f32.mxu0 0.0
        %1822 = vmatmul.mubr.f32.gmra.mxu0 %v1694
        %v1823 = vpop.f32.mrf.mxu0
        %v1824 = vadd.f32 %v1667, %v1823
        %v1825 = vpop.f32.mrf.mxu0
        %1826 = vmatprep.mubr.f32.mxu0 0.0
        %1827 = vmatmul.mubr.f32.gmra.mxu0 %v1697
        %v1828 = vpop.f32.mrf.mxu0
        %v1829 = vadd.f32 %v1667, %v1828
        %v1830 = vpop.f32.mrf.mxu0
        %1831 = vmatprep.mubr.f32.mxu0 0.0
        %1832 = vmatmul.mubr.f32.gmra.mxu0 %v1700
        %v1833 = vpop.f32.mrf.mxu0
        %v1834 = vadd.f32 %v1667, %v1833
        %v1835 = vpop.f32.mrf.mxu0
        %1836 = vmatprep.mubr.f32.mxu0 0.0
        %1837 = vmatmul.mubr.f32.gmra.mxu0 %v1703
        %v1838 = vpop.f32.mrf.mxu0
        %v1839 = vadd.f32 %v1667, %v1838
        %v1840 = vpop.f32.mrf.mxu0
        %1841 = vmatprep.mubr.f32.mxu0 0.0
        %1842 = vmatmul.mubr.f32.gmra.mxu0 %v1706
        %v1843 = vpop.f32.mrf.mxu0
        %v1844 = vadd.f32 %v1667, %v1843
        %v1845 = vpop.f32.mrf.mxu0
        %1846 = vmatprep.mubr.f32.mxu0 0.0
        %1847 = vmatmul.mubr.f32.gmra.mxu0 %v1709
        %v1848 = vpop.f32.mrf.mxu0
        %v1849 = vadd.f32 %v1667, %v1848
        %v1850 = vpop.f32.mrf.mxu0
        %1851 = vmatprep.mubr.f32.mxu0 0.0
        %1852 = vmatmul.mubr.f32.gmra.mxu0 %v1712
        %v1853 = vpop.f32.mrf.mxu0
        %v1854 = vadd.f32 %v1667, %v1853
        %v1855 = vpop.f32.mrf.mxu0
        %1856 = vmatprep.mubr.f32.mxu0 0.0
        %1857 = vmatmul.mubr.f32.gmra.mxu0 %v1715
        %v1858 = vpop.f32.mrf.mxu0
        %v1859 = vadd.f32 %v1667, %v1858
        %v1860 = vpop.f32.mrf.mxu0
        %1861 = vdwg.mxu0
        %1910 = vrot.lane.b32.xlu0 %v842, 96
        %v1911 = vpop.permute.xlu0 %1910
        %1912 = vrot.lane.b32.xlu0 %v847, 96
        %v1913 = vpop.permute.xlu0 %1912
        %1914 = vrot.lane.b32.xlu0 %v852, 96
        %v1915 = vpop.permute.xlu0 %1914
        %1916 = vrot.lane.b32.xlu0 %v857, 96
        %v1917 = vpop.permute.xlu0 %1916
        %1918 = vrot.lane.b32.xlu0 %v862, 96
        %v1919 = vpop.permute.xlu0 %1918
        %1920 = vrot.lane.b32.xlu0 %v867, 96
        %v1921 = vpop.permute.xlu0 %1920
        %1922 = vrot.lane.b32.xlu0 %v872, 96
        %v1923 = vpop.permute.xlu0 %1922
        %1924 = vrot.lane.b32.xlu0 %v877, 96
        %v1925 = vpop.permute.xlu0 %1924
        %1926 = vrot.lane.b32.xlu0 %v882, 96
        %v1927 = vpop.permute.xlu0 %1926
        %1928 = vrot.lane.b32.xlu0 %v887, 96
        %v1929 = vpop.permute.xlu0 %1928
        %1930 = vrot.lane.b32.xlu0 %v892, 96
        %v1931 = vpop.permute.xlu0 %1930
        %1932 = vrot.lane.b32.xlu0 %v897, 96
        %v1933 = vpop.permute.xlu0 %1932
        %1934 = vrot.lane.b32.xlu0 %v902, 96
        %v1935 = vpop.permute.xlu0 %1934
        %1936 = vrot.lane.b32.xlu0 %v907, 96
        %v1937 = vpop.permute.xlu0 %1936
        %1938 = vrot.lane.b32.xlu0 %v912, 96
        %v1939 = vpop.permute.xlu0 %1938
        %1940 = vrot.lane.b32.xlu0 %v917, 96
        %v1941 = vpop.permute.xlu0 %1940
        %1942 = vrot.lane.b32.xlu0 %v922, 96
        %v1943 = vpop.permute.xlu0 %1942
        %1944 = vrot.lane.b32.xlu0 %v927, 96
        %v1945 = vpop.permute.xlu0 %1944
        %1946 = vrot.lane.b32.xlu0 %v932, 96
        %v1947 = vpop.permute.xlu0 %1946
        %1948 = vrot.lane.b32.xlu0 %v937, 96
        %v1949 = vpop.permute.xlu0 %1948
        %1950 = vrot.lane.b32.xlu0 %v942, 96
        %v1951 = vpop.permute.xlu0 %1950
        %1952 = vrot.lane.b32.xlu0 %v947, 96
        %v1953 = vpop.permute.xlu0 %1952
        %1954 = vrot.lane.b32.xlu0 %v952, 96
        %v1955 = vpop.permute.xlu0 %1954
        %1956 = vrot.lane.b32.xlu0 %v957, 96
        %v1957 = vpop.permute.xlu0 %1956
        %1958 = vrot.lane.b32.xlu0 %v962, 96
        %v1959 = vpop.permute.xlu0 %1958
        %1960 = vrot.lane.b32.xlu0 %v967, 96
        %v1961 = vpop.permute.xlu0 %1960
        %1962 = vrot.lane.b32.xlu0 %v972, 96
        %v1963 = vpop.permute.xlu0 %1962
        %1964 = vrot.lane.b32.xlu0 %v977, 96
        %v1965 = vpop.permute.xlu0 %1964
        %1966 = vrot.lane.b32.xlu0 %v982, 96
        %v1967 = vpop.permute.xlu0 %1966
        %1968 = vrot.lane.b32.xlu0 %v987, 96
        %v1969 = vpop.permute.xlu0 %1968
        %1970 = vrot.lane.b32.xlu0 %v992, 96
        %v1971 = vpop.permute.xlu0 %1970
        %1972 = vrot.lane.b32.xlu0 %v997, 96
        %v1973 = vpop.permute.xlu0 %1972
        %1974 = vrot.lane.b32.xlu0 %v1002, 96
        %v1975 = vpop.permute.xlu0 %1974
        %1976 = vrot.lane.b32.xlu0 %v1007, 96
        %v1977 = vpop.permute.xlu0 %1976
        %1978 = vrot.lane.b32.xlu0 %v1012, 96
        %v1979 = vpop.permute.xlu0 %1978
        %1980 = vrot.lane.b32.xlu0 %v1017, 96
        %v1981 = vpop.permute.xlu0 %1980
        %1982 = vrot.lane.b32.xlu0 %v1022, 96
        %v1983 = vpop.permute.xlu0 %1982
        %1984 = vrot.lane.b32.xlu0 %v1027, 96
        %v1985 = vpop.permute.xlu0 %1984
        %1986 = vrot.lane.b32.xlu0 %v1032, 96
        %v1987 = vpop.permute.xlu0 %1986
        %1988 = vrot.lane.b32.xlu0 %v1037, 96
        %v1989 = vpop.permute.xlu0 %1988
        %1990 = vrot.lane.b32.xlu0 %v1042, 96
        %v1991 = vpop.permute.xlu0 %1990
        %1992 = vrot.lane.b32.xlu0 %v1047, 96
        %v1993 = vpop.permute.xlu0 %1992
        %1994 = vrot.lane.b32.xlu0 %v1052, 96
        %v1995 = vpop.permute.xlu0 %1994
        %1996 = vrot.lane.b32.xlu0 %v1057, 96
        %v1997 = vpop.permute.xlu0 %1996
        %1998 = vrot.lane.b32.xlu0 %v1062, 96
        %v1999 = vpop.permute.xlu0 %1998
        %2000 = vrot.lane.b32.xlu0 %v1067, 96
        %v2001 = vpop.permute.xlu0 %2000
        %2002 = vrot.lane.b32.xlu0 %v1072, 96
        %v2003 = vpop.permute.xlu0 %2002
        %2004 = vrot.lane.b32.xlu0 %v1077, 96
        %v2005 = vpop.permute.xlu0 %2004
        %v2054 = vmul.f32 %v842, %v1911
        %v2055 = vmul.f32 %v847, %v1913
        %v2056 = vmul.f32 %v852, %v1915
        %v2057 = vmul.f32 %v857, %v1917
        %v2058 = vmul.f32 %v862, %v1919
        %v2059 = vmul.f32 %v867, %v1921
        %v2060 = vmul.f32 %v872, %v1923
        %v2061 = vmul.f32 %v877, %v1925
        %v2062 = vmul.f32 %v882, %v1927
        %v2063 = vmul.f32 %v887, %v1929
        %v2064 = vmul.f32 %v892, %v1931
        %v2065 = vmul.f32 %v897, %v1933
        %v2066 = vmul.f32 %v902, %v1935
        %v2067 = vmul.f32 %v907, %v1937
        %v2068 = vmul.f32 %v912, %v1939
        %v2069 = vmul.f32 %v917, %v1941
        %v2070 = vmul.f32 %v922, %v1943
        %v2071 = vmul.f32 %v927, %v1945
        %v2072 = vmul.f32 %v932, %v1947
        %v2073 = vmul.f32 %v937, %v1949
        %v2074 = vmul.f32 %v942, %v1951
        %v2075 = vmul.f32 %v947, %v1953
        %v2076 = vmul.f32 %v952, %v1955
        %v2077 = vmul.f32 %v957, %v1957
        %v2078 = vmul.f32 %v962, %v1959
        %v2079 = vmul.f32 %v967, %v1961
        %v2080 = vmul.f32 %v972, %v1963
        %v2081 = vmul.f32 %v977, %v1965
        %v2082 = vmul.f32 %v982, %v1967
        %v2083 = vmul.f32 %v987, %v1969
        %v2084 = vmul.f32 %v992, %v1971
        %v2085 = vmul.f32 %v997, %v1973
        %v2086 = vmul.f32 %v1002, %v1975
        %v2087 = vmul.f32 %v1007, %v1977
        %v2088 = vmul.f32 %v1012, %v1979
        %v2089 = vmul.f32 %v1017, %v1981
        %v2090 = vmul.f32 %v1022, %v1983
        %v2091 = vmul.f32 %v1027, %v1985
        %v2092 = vmul.f32 %v1032, %v1987
        %v2093 = vmul.f32 %v1037, %v1989
        %v2094 = vmul.f32 %v1042, %v1991
        %v2095 = vmul.f32 %v1047, %v1993
        %v2096 = vmul.f32 %v1052, %v1995
        %v2097 = vmul.f32 %v1057, %v1997
        %v2098 = vmul.f32 %v1062, %v1999
        %v2099 = vmul.f32 %v1067, %v2001
        %v2100 = vmul.f32 %v1072, %v2003
        %v2101 = vmul.f32 %v1077, %v2005
        %v2102 = vsel %vm630, %v2054, 0.0
        %v2103 = vsel %vm630, %v2070, 0.0
        %v2104 = vadd.f32 %v2102, %v2103
        %v2105 = vsel %vm630, %v2086, 0.0
        %v2106 = vadd.f32 %v2104, %v2105
        %v2107 = vsel %vm630, %v2055, 0.0
        %v2108 = vsel %vm630, %v2071, 0.0
        %v2109 = vadd.f32 %v2107, %v2108
        %v2110 = vsel %vm630, %v2087, 0.0
        %v2111 = vadd.f32 %v2109, %v2110
        %v2112 = vsel %vm630, %v2056, 0.0
        %v2113 = vsel %vm630, %v2072, 0.0
        %v2114 = vadd.f32 %v2112, %v2113
        %v2115 = vsel %vm630, %v2088, 0.0
        %v2116 = vadd.f32 %v2114, %v2115
        %v2117 = vsel %vm630, %v2057, 0.0
        %v2118 = vsel %vm630, %v2073, 0.0
        %v2119 = vadd.f32 %v2117, %v2118
        %v2120 = vsel %vm630, %v2089, 0.0
        %v2121 = vadd.f32 %v2119, %v2120
        %v2122 = vsel %vm630, %v2058, 0.0
        %v2123 = vsel %vm630, %v2074, 0.0
        %v2124 = vadd.f32 %v2122, %v2123
        %v2125 = vsel %vm630, %v2090, 0.0
        %v2126 = vadd.f32 %v2124, %v2125
        %v2127 = vsel %vm630, %v2059, 0.0
        %v2128 = vsel %vm630, %v2075, 0.0
        %v2129 = vadd.f32 %v2127, %v2128
        %v2130 = vsel %vm630, %v2091, 0.0
        %v2131 = vadd.f32 %v2129, %v2130
        %v2132 = vsel %vm630, %v2060, 0.0
        %v2133 = vsel %vm630, %v2076, 0.0
        %v2134 = vadd.f32 %v2132, %v2133
        %v2135 = vsel %vm630, %v2092, 0.0
        %v2136 = vadd.f32 %v2134, %v2135
        %v2137 = vsel %vm630, %v2061, 0.0
        %v2138 = vsel %vm630, %v2077, 0.0
        %v2139 = vadd.f32 %v2137, %v2138
        %v2140 = vsel %vm630, %v2093, 0.0
        %v2141 = vadd.f32 %v2139, %v2140
        %v2142 = vsel %vm630, %v2062, 0.0
        %v2143 = vsel %vm630, %v2078, 0.0
        %v2144 = vadd.f32 %v2142, %v2143
        %v2145 = vsel %vm630, %v2094, 0.0
        %v2146 = vadd.f32 %v2144, %v2145
        %v2147 = vsel %vm630, %v2063, 0.0
        %v2148 = vsel %vm630, %v2079, 0.0
        %v2149 = vadd.f32 %v2147, %v2148
        %v2150 = vsel %vm630, %v2095, 0.0
        %v2151 = vadd.f32 %v2149, %v2150
        %v2152 = vsel %vm630, %v2064, 0.0
        %v2153 = vsel %vm630, %v2080, 0.0
        %v2154 = vadd.f32 %v2152, %v2153
        %v2155 = vsel %vm630, %v2096, 0.0
        %v2156 = vadd.f32 %v2154, %v2155
        %v2157 = vsel %vm630, %v2065, 0.0
        %v2158 = vsel %vm630, %v2081, 0.0
        %v2159 = vadd.f32 %v2157, %v2158
        %v2160 = vsel %vm630, %v2097, 0.0
        %v2161 = vadd.f32 %v2159, %v2160
        %v2162 = vsel %vm630, %v2066, 0.0
        %v2163 = vsel %vm630, %v2082, 0.0
        %v2164 = vadd.f32 %v2162, %v2163
        %v2165 = vsel %vm630, %v2098, 0.0
        %v2166 = vadd.f32 %v2164, %v2165
        %v2167 = vsel %vm630, %v2067, 0.0
        %v2168 = vsel %vm630, %v2083, 0.0
        %v2169 = vadd.f32 %v2167, %v2168
        %v2170 = vsel %vm630, %v2099, 0.0
        %v2171 = vadd.f32 %v2169, %v2170
        %v2172 = vsel %vm630, %v2068, 0.0
        %v2173 = vsel %vm630, %v2084, 0.0
        %v2174 = vadd.f32 %v2172, %v2173
        %v2175 = vsel %vm630, %v2100, 0.0
        %v2176 = vadd.f32 %v2174, %v2175
        %v2177 = vsel %vm630, %v2069, 0.0
        %v2178 = vsel %vm630, %v2085, 0.0
        %v2179 = vadd.f32 %v2177, %v2178
        %v2180 = vsel %vm630, %v2101, 0.0
        %v2181 = vadd.f32 %v2179, %v2180
        %2198 = vrot.lane.b32.xlu0 %v1784, 96
        %v2199 = vpop.permute.xlu0 %2198
        %2200 = vrot.lane.b32.xlu0 %v1789, 96
        %v2201 = vpop.permute.xlu0 %2200
        %2202 = vrot.lane.b32.xlu0 %v1794, 96
        %v2203 = vpop.permute.xlu0 %2202
        %2204 = vrot.lane.b32.xlu0 %v1799, 96
        %v2205 = vpop.permute.xlu0 %2204
        %2206 = vrot.lane.b32.xlu0 %v1804, 96
        %v2207 = vpop.permute.xlu0 %2206
        %2208 = vrot.lane.b32.xlu0 %v1809, 96
        %v2209 = vpop.permute.xlu0 %2208
        %2210 = vrot.lane.b32.xlu0 %v1814, 96
        %v2211 = vpop.permute.xlu0 %2210
        %2212 = vrot.lane.b32.xlu0 %v1819, 96
        %v2213 = vpop.permute.xlu0 %2212
        %2214 = vrot.lane.b32.xlu0 %v1824, 96
        %v2215 = vpop.permute.xlu0 %2214
        %2216 = vrot.lane.b32.xlu0 %v1829, 96
        %v2217 = vpop.permute.xlu0 %2216
        %2218 = vrot.lane.b32.xlu0 %v1834, 96
        %v2219 = vpop.permute.xlu0 %2218
        %2220 = vrot.lane.b32.xlu0 %v1839, 96
        %v2221 = vpop.permute.xlu0 %2220
        %2222 = vrot.lane.b32.xlu0 %v1844, 96
        %v2223 = vpop.permute.xlu0 %2222
        %2224 = vrot.lane.b32.xlu0 %v1849, 96
        %v2225 = vpop.permute.xlu0 %2224
        %2226 = vrot.lane.b32.xlu0 %v1854, 96
        %v2227 = vpop.permute.xlu0 %2226
        %2228 = vrot.lane.b32.xlu0 %v1859, 96
        %v2229 = vpop.permute.xlu0 %2228
        %v2246 = vmul.f32 %v2106, %v2199
        %v2247 = vmul.f32 %v2111, %v2201
        %v2248 = vmul.f32 %v2116, %v2203
        %v2249 = vmul.f32 %v2121, %v2205
        %v2250 = vmul.f32 %v2126, %v2207
        %v2251 = vmul.f32 %v2131, %v2209
        %v2252 = vmul.f32 %v2136, %v2211
        %v2253 = vmul.f32 %v2141, %v2213
        %v2254 = vmul.f32 %v2146, %v2215
        %v2255 = vmul.f32 %v2151, %v2217
        %v2256 = vmul.f32 %v2156, %v2219
        %v2257 = vmul.f32 %v2161, %v2221
        %v2258 = vmul.f32 %v2166, %v2223
        %v2259 = vmul.f32 %v2171, %v2225
        %v2260 = vmul.f32 %v2176, %v2227
        %v2261 = vmul.f32 %v2181, %v2229
        %v2262 = vadd.f32 %v562, %v2246
        %v2263 = vadd.f32 %v563, %v2247
        %v2264 = vadd.f32 %v564, %v2248
        %v2265 = vadd.f32 %v565, %v2249
        %v2266 = vadd.f32 %v566, %v2250
        %v2267 = vadd.f32 %v567, %v2251
        %v2268 = vadd.f32 %v568, %v2252
        %v2269 = vadd.f32 %v569, %v2253
        %v2270 = vadd.f32 %v570, %v2254
        %v2271 = vadd.f32 %v571, %v2255
        %v2272 = vadd.f32 %v572, %v2256
        %v2273 = vadd.f32 %v573, %v2257
        %v2274 = vadd.f32 %v574, %v2258
        %v2275 = vadd.f32 %v575, %v2259
        %v2276 = vadd.f32 %v576, %v2260
        %v2277 = vadd.f32 %v577, %v2261
        %2278 = vrot.lane.b32.xlu0 %v1784, 64
        %v2279 = vpop.permute.xlu0 %2278
        %2280 = vrot.lane.b32.xlu0 %v1789, 64
        %v2281 = vpop.permute.xlu0 %2280
        %2282 = vrot.lane.b32.xlu0 %v1794, 64
        %v2283 = vpop.permute.xlu0 %2282
        %2284 = vrot.lane.b32.xlu0 %v1799, 64
        %v2285 = vpop.permute.xlu0 %2284
        %2286 = vrot.lane.b32.xlu0 %v1804, 64
        %v2287 = vpop.permute.xlu0 %2286
        %2288 = vrot.lane.b32.xlu0 %v1809, 64
        %v2289 = vpop.permute.xlu0 %2288
        %2290 = vrot.lane.b32.xlu0 %v1814, 64
        %v2291 = vpop.permute.xlu0 %2290
        %2292 = vrot.lane.b32.xlu0 %v1819, 64
        %v2293 = vpop.permute.xlu0 %2292
        %2294 = vrot.lane.b32.xlu0 %v1824, 64
        %v2295 = vpop.permute.xlu0 %2294
        %2296 = vrot.lane.b32.xlu0 %v1829, 64
        %v2297 = vpop.permute.xlu0 %2296
        %2298 = vrot.lane.b32.xlu0 %v1834, 64
        %v2299 = vpop.permute.xlu0 %2298
        %2300 = vrot.lane.b32.xlu0 %v1839, 64
        %v2301 = vpop.permute.xlu0 %2300
        %2302 = vrot.lane.b32.xlu0 %v1844, 64
        %v2303 = vpop.permute.xlu0 %2302
        %2304 = vrot.lane.b32.xlu0 %v1849, 64
        %v2305 = vpop.permute.xlu0 %2304
        %2306 = vrot.lane.b32.xlu0 %v1854, 64
        %v2307 = vpop.permute.xlu0 %2306
        %2308 = vrot.lane.b32.xlu0 %v1859, 64
        %v2309 = vpop.permute.xlu0 %2308
        %v2326 = vadd.f32 %v2262, %v2279
        %v2327 = vadd.f32 %v2263, %v2281
        %v2328 = vadd.f32 %v2264, %v2283
        %v2329 = vadd.f32 %v2265, %v2285
        %v2330 = vadd.f32 %v2266, %v2287
        %v2331 = vadd.f32 %v2267, %v2289
        %v2332 = vadd.f32 %v2268, %v2291
        %v2333 = vadd.f32 %v2269, %v2293
        %v2334 = vadd.f32 %v2270, %v2295
        %v2335 = vadd.f32 %v2271, %v2297
        %v2336 = vadd.f32 %v2272, %v2299
        %v2337 = vadd.f32 %v2273, %v2301
        %v2338 = vadd.f32 %v2274, %v2303
        %v2339 = vadd.f32 %v2275, %v2305
        %v2340 = vadd.f32 %v2276, %v2307
        %v2341 = vadd.f32 %v2277, %v2309
        %2342 = vst.msk [vmem:[%s559] sm:$0xff] %vm630, %v2326
        %2343 = vst.msk [vmem:[%s559 + $0x8] sm:$0xff] %vm630, %v2327
        %2344 = vst.msk [vmem:[%s559 + $0x10] sm:$0xff] %vm630, %v2328
        %2345 = vst.msk [vmem:[%s559 + $0x18] sm:$0xff] %vm630, %v2329
        %2346 = vst.msk [vmem:[%s559 + $0x20] sm:$0xff] %vm630, %v2330
        %2347 = vst.msk [vmem:[%s559 + $0x28] sm:$0xff] %vm630, %v2331
        %2348 = vst.msk [vmem:[%s559 + $0x30] sm:$0xff] %vm630, %v2332
        %2349 = vst.msk [vmem:[%s559 + $0x38] sm:$0xff] %vm630, %v2333
        %2350 = vst.msk [vmem:[%s559 + $0x40] sm:$0xff] %vm630, %v2334
        %2351 = vst.msk [vmem:[%s559 + $0x48] sm:$0xff] %vm630, %v2335
        %2352 = vst.msk [vmem:[%s559 + $0x50] sm:$0xff] %vm630, %v2336
        %2353 = vst.msk [vmem:[%s559 + $0x58] sm:$0xff] %vm630, %v2337
        %2354 = vst.msk [vmem:[%s559 + $0x60] sm:$0xff] %vm630, %v2338
        %2355 = vst.msk [vmem:[%s559 + $0x68] sm:$0xff] %vm630, %v2339
        %2356 = vst.msk [vmem:[%s559 + $0x70] sm:$0xff] %vm630, %v2340
        %2357 = vst.msk [vmem:[%s559 + $0x78] sm:$0xff] %vm630, %v2341
        %v2358 = vmul.f32 %v842, %v1784
        %v2359 = vmul.f32 %v847, %v1789
        %v2360 = vmul.f32 %v852, %v1794
        %v2361 = vmul.f32 %v857, %v1799
        %v2362 = vmul.f32 %v862, %v1804
        %v2363 = vmul.f32 %v867, %v1809
        %v2364 = vmul.f32 %v872, %v1814
        %v2365 = vmul.f32 %v877, %v1819
        %v2366 = vmul.f32 %v882, %v1824
        %v2367 = vmul.f32 %v887, %v1829
        %v2368 = vmul.f32 %v892, %v1834
        %v2369 = vmul.f32 %v897, %v1839
        %v2370 = vmul.f32 %v902, %v1844
        %v2371 = vmul.f32 %v907, %v1849
        %v2372 = vmul.f32 %v912, %v1854
        %v2373 = vmul.f32 %v917, %v1859
        %v2374 = vmul.f32 %v922, %v1784
        %v2375 = vmul.f32 %v927, %v1789
        %v2376 = vmul.f32 %v932, %v1794
        %v2377 = vmul.f32 %v937, %v1799
        %v2378 = vmul.f32 %v942, %v1804
        %v2379 = vmul.f32 %v947, %v1809
        %v2380 = vmul.f32 %v952, %v1814
        %v2381 = vmul.f32 %v957, %v1819
        %v2382 = vmul.f32 %v962, %v1824
        %v2383 = vmul.f32 %v967, %v1829
        %v2384 = vmul.f32 %v972, %v1834
        %v2385 = vmul.f32 %v977, %v1839
        %v2386 = vmul.f32 %v982, %v1844
        %v2387 = vmul.f32 %v987, %v1849
        %v2388 = vmul.f32 %v992, %v1854
        %v2389 = vmul.f32 %v997, %v1859
        %v2390 = vmul.f32 %v1002, %v1784
        %v2391 = vmul.f32 %v1007, %v1789
        %v2392 = vmul.f32 %v1012, %v1794
        %v2393 = vmul.f32 %v1017, %v1799
        %v2394 = vmul.f32 %v1022, %v1804
        %v2395 = vmul.f32 %v1027, %v1809
        %v2396 = vmul.f32 %v1032, %v1814
        %v2397 = vmul.f32 %v1037, %v1819
        %v2398 = vmul.f32 %v1042, %v1824
        %v2399 = vmul.f32 %v1047, %v1829
        %v2400 = vmul.f32 %v1052, %v1834
        %v2401 = vmul.f32 %v1057, %v1839
        %v2402 = vmul.f32 %v1062, %v1844
        %v2403 = vmul.f32 %v1067, %v1849
        %v2404 = vmul.f32 %v1072, %v1854
        %v2405 = vmul.f32 %v1077, %v1859
        %v2406 = vadd.f32 %v578, %v2358
        %v2407 = vadd.f32 %v579, %v2359
        %v2408 = vadd.f32 %v580, %v2360
        %v2409 = vadd.f32 %v581, %v2361
        %v2410 = vadd.f32 %v582, %v2362
        %v2411 = vadd.f32 %v583, %v2363
        %v2412 = vadd.f32 %v584, %v2364
        %v2413 = vadd.f32 %v585, %v2365
        %v2414 = vadd.f32 %v586, %v2366
        %v2415 = vadd.f32 %v587, %v2367
        %v2416 = vadd.f32 %v588, %v2368
        %v2417 = vadd.f32 %v589, %v2369
        %v2418 = vadd.f32 %v590, %v2370
        %v2419 = vadd.f32 %v591, %v2371
        %v2420 = vadd.f32 %v592, %v2372
        %v2421 = vadd.f32 %v593, %v2373
        %v2422 = vadd.f32 %v594, %v2374
        %v2423 = vadd.f32 %v595, %v2375
        %v2424 = vadd.f32 %v596, %v2376
        %v2425 = vadd.f32 %v597, %v2377
        %v2426 = vadd.f32 %v598, %v2378
        %v2427 = vadd.f32 %v599, %v2379
        %v2428 = vadd.f32 %v600, %v2380
        %v2429 = vadd.f32 %v601, %v2381
        %v2430 = vadd.f32 %v602, %v2382
        %v2431 = vadd.f32 %v603, %v2383
        %v2432 = vadd.f32 %v604, %v2384
        %v2433 = vadd.f32 %v605, %v2385
        %v2434 = vadd.f32 %v606, %v2386
        %v2435 = vadd.f32 %v607, %v2387
        %v2436 = vadd.f32 %v608, %v2388
        %v2437 = vadd.f32 %v609, %v2389
        %v2438 = vadd.f32 %v610, %v2390
        %v2439 = vadd.f32 %v611, %v2391
        %v2440 = vadd.f32 %v612, %v2392
        %v2441 = vadd.f32 %v613, %v2393
        %v2442 = vadd.f32 %v614, %v2394
        %v2443 = vadd.f32 %v615, %v2395
        %v2444 = vadd.f32 %v616, %v2396
        %v2445 = vadd.f32 %v617, %v2397
        %v2446 = vadd.f32 %v618, %v2398
        %v2447 = vadd.f32 %v619, %v2399
        %v2448 = vadd.f32 %v620, %v2400
        %v2449 = vadd.f32 %v621, %v2401
        %v2450 = vadd.f32 %v622, %v2402
        %v2451 = vadd.f32 %v623, %v2403
        %v2452 = vadd.f32 %v624, %v2404
        %v2453 = vadd.f32 %v625, %v2405
        %2454 = vst.msk [vmem:[%s547] sm:$0xff] %vm630, %v2406
        %2455 = vst.msk [vmem:[%s547 + $0x8] sm:$0xff] %vm630, %v2407
        %2456 = vst.msk [vmem:[%s547 + $0x10] sm:$0xff] %vm630, %v2408
        %2457 = vst.msk [vmem:[%s547 + $0x18] sm:$0xff] %vm630, %v2409
        %2458 = vst.msk [vmem:[%s547 + $0x20] sm:$0xff] %vm630, %v2410
        %2459 = vst.msk [vmem:[%s547 + $0x28] sm:$0xff] %vm630, %v2411
        %2460 = vst.msk [vmem:[%s547 + $0x30] sm:$0xff] %vm630, %v2412
        %2461 = vst.msk [vmem:[%s547 + $0x38] sm:$0xff] %vm630, %v2413
        %2462 = vst.msk [vmem:[%s547 + $0x40] sm:$0xff] %vm630, %v2414
        %2463 = vst.msk [vmem:[%s547 + $0x48] sm:$0xff] %vm630, %v2415
        %2464 = vst.msk [vmem:[%s547 + $0x50] sm:$0xff] %vm630, %v2416
        %2465 = vst.msk [vmem:[%s547 + $0x58] sm:$0xff] %vm630, %v2417
        %2466 = vst.msk [vmem:[%s547 + $0x60] sm:$0xff] %vm630, %v2418
        %2467 = vst.msk [vmem:[%s547 + $0x68] sm:$0xff] %vm630, %v2419
        %2468 = vst.msk [vmem:[%s547 + $0x70] sm:$0xff] %vm630, %v2420
        %2469 = vst.msk [vmem:[%s547 + $0x78] sm:$0xff] %vm630, %v2421
        %2470 = vst.msk [vmem:[%s547 + $0x80] sm:$0xff] %vm630, %v2422
        %2471 = vst.msk [vmem:[%s547 + $0x88] sm:$0xff] %vm630, %v2423
        %2472 = vst.msk [vmem:[%s547 + $0x90] sm:$0xff] %vm630, %v2424
        %2473 = vst.msk [vmem:[%s547 + $0x98] sm:$0xff] %vm630, %v2425
        %2474 = vst.msk [vmem:[%s547 + $0xa0] sm:$0xff] %vm630, %v2426
        %2475 = vst.msk [vmem:[%s547 + $0xa8] sm:$0xff] %vm630, %v2427
        %2476 = vst.msk [vmem:[%s547 + $0xb0] sm:$0xff] %vm630, %v2428
        %2477 = vst.msk [vmem:[%s547 + $0xb8] sm:$0xff] %vm630, %v2429
        %2478 = vst.msk [vmem:[%s547 + $0xc0] sm:$0xff] %vm630, %v2430
        %2479 = vst.msk [vmem:[%s547 + $0xc8] sm:$0xff] %vm630, %v2431
        %2480 = vst.msk [vmem:[%s547 + $0xd0] sm:$0xff] %vm630, %v2432
        %2481 = vst.msk [vmem:[%s547 + $0xd8] sm:$0xff] %vm630, %v2433
        %2482 = vst.msk [vmem:[%s547 + $0xe0] sm:$0xff] %vm630, %v2434
        %2483 = vst.msk [vmem:[%s547 + $0xe8] sm:$0xff] %vm630, %v2435
        %2484 = vst.msk [vmem:[%s547 + $0xf0] sm:$0xff] %vm630, %v2436
        %2485 = vst.msk [vmem:[%s547 + $0xf8] sm:$0xff] %vm630, %v2437
        %2486 = vst.msk [vmem:[%s547 + $0x100] sm:$0xff] %vm630, %v2438
        %2487 = vst.msk [vmem:[%s547 + $0x108] sm:$0xff] %vm630, %v2439
        %2488 = vst.msk [vmem:[%s547 + $0x110] sm:$0xff] %vm630, %v2440
        %2489 = vst.msk [vmem:[%s547 + $0x118] sm:$0xff] %vm630, %v2441
        %2490 = vst.msk [vmem:[%s547 + $0x120] sm:$0xff] %vm630, %v2442
        %2491 = vst.msk [vmem:[%s547 + $0x128] sm:$0xff] %vm630, %v2443
        %2492 = vst.msk [vmem:[%s547 + $0x130] sm:$0xff] %vm630, %v2444
        %2493 = vst.msk [vmem:[%s547 + $0x138] sm:$0xff] %vm630, %v2445
        %2494 = vst.msk [vmem:[%s547 + $0x140] sm:$0xff] %vm630, %v2446
        %2495 = vst.msk [vmem:[%s547 + $0x148] sm:$0xff] %vm630, %v2447
        %2496 = vst.msk [vmem:[%s547 + $0x150] sm:$0xff] %vm630, %v2448
        %2497 = vst.msk [vmem:[%s547 + $0x158] sm:$0xff] %vm630, %v2449
        %2498 = vst.msk [vmem:[%s547 + $0x160] sm:$0xff] %vm630, %v2450
        %2499 = vst.msk [vmem:[%s547 + $0x168] sm:$0xff] %vm630, %v2451
        %2500 = vst.msk [vmem:[%s547 + $0x170] sm:$0xff] %vm630, %v2452
        %2501 = vst.msk [vmem:[%s547 + $0x178] sm:$0xff] %vm630, %v2453
        %s2502 = smul.u32 16, %s20
        %p2503 = scmp.lt.s32.totalorder %s2502, 63
        %s2504 = scalar_select %p2503, %s2502, 63
        %s2505 = smul.addr %s2504, 8
        %s2506 = scalar_lea.vmem %s7, %s2505
        %s2507 = sand.u32 %s211, 1
        %s2508 = sand.u32 %s211, 1
        %s2509 = smul.addr %s2508, 384
        %s2510 = scalar_lea.vmem [#allocation3], %s2509
        // Predicated region
        $region87: #{painn_update_3nf.1} parent=81 // pred_check
          %p2511 = pneg %p195
        $region88: #{painn_update_3nf.1} parent=81 // pred_check_branch
          %2513 = sbr.rel (%p2511) target = $region90
        $region89: #{painn_update_3nf.1} parent=81 // pred_region
          %s2514 = smul.u32 16, %s20
        $region90: #{painn_update_3nf.1} parent=81 // pred_fallthru
          _
        // Predicated region
        $region91: #{painn_update_3nf.1} parent=81 // pred_check
          %p2515 = pneg %p221
        $region92: #{painn_update_3nf.1} parent=81 // pred_check_branch
          %2517 = sbr.rel (%p2515) target = $region94
        $region93: #{painn_update_3nf.1} parent=81 // pred_region
          %s2518 = smul.u32 16, %s20
          %s2519 = smul.addr %s2518, 8
          %s2520 = scalar_lea.vmem %s8, %s2519
          // Predicated region
          $region95: #{painn_update_3nf.1} parent=93 // pred_check
            _
          $region96: #{painn_update_3nf.1} parent=93 // pred_check_branch
            %2522 = sbr.rel (0) target = $region98
          $region97: #{painn_update_3nf.1} parent=93 // pred_region
            // Predicated region
            $region99: #{painn_update_3nf.1} parent=97 // pred_check
              _
            $region100: #{painn_update_3nf.1} parent=97 // pred_check_branch
              %2524 = sbr.rel (0) target = $region102
            $region101: #{painn_update_3nf.1} parent=97 // pred_region
              // Predicated region
              $region114: #{painn_update_3nf.1} parent=101 // pred_check
                _
              $region115: #{painn_update_3nf.1} parent=101 // pred_check_branch
                %2634 = sbr.rel (0) target = $region117
              $region116: #{painn_update_3nf.1} parent=101 // pred_region
                loop: start=0, step=1, limit=1
                $region118: #{painn_update_3nf.1} parent=116 // loop_pre_header
                  _
                $region119: #{painn_update_3nf.1} parent=116 // loop_header
                  %s2636 = sphi 0, %s2640
                  %p2637 = scmp.ge.s32.totalorder %s2636, 1
                  %s2641 = sphi %s2510, %s2510
                  %s2642 = sphi %s2520, %s2520
                $region120: #{painn_update_3nf.1} parent=116 // loop_header_branch
                  %2639 = sbr.rel (%p2637) target = $region124
                $region121: #{painn_update_3nf.1} parent=116 // loop_body
                  %v2643 = vld [vmem:[%s2641] sm:$0xff]
                  %2644 = vst [vmem:[%s2642] sm:$0xff] %v2643
                  %v2645 = vld [vmem:[%s2641 + $0x8] sm:$0xff]
                  %2646 = vst [vmem:[%s2642 + $0x8] sm:$0xff] %v2645
                  %v2647 = vld [vmem:[%s2641 + $0x10] sm:$0xff]
                  %2648 = vst [vmem:[%s2642 + $0x10] sm:$0xff] %v2647
                  %v2649 = vld [vmem:[%s2641 + $0x18] sm:$0xff]
                  %2650 = vst [vmem:[%s2642 + $0x18] sm:$0xff] %v2649
                  %v2651 = vld [vmem:[%s2641 + $0x20] sm:$0xff]
                  %2652 = vst [vmem:[%s2642 + $0x20] sm:$0xff] %v2651
                  %v2653 = vld [vmem:[%s2641 + $0x28] sm:$0xff]
                  %2654 = vst [vmem:[%s2642 + $0x28] sm:$0xff] %v2653
                  %v2655 = vld [vmem:[%s2641 + $0x30] sm:$0xff]
                  %2656 = vst [vmem:[%s2642 + $0x30] sm:$0xff] %v2655
                  %v2657 = vld [vmem:[%s2641 + $0x38] sm:$0xff]
                  %2658 = vst [vmem:[%s2642 + $0x38] sm:$0xff] %v2657
                  %v2659 = vld [vmem:[%s2641 + $0x40] sm:$0xff]
                  %2660 = vst [vmem:[%s2642 + $0x40] sm:$0xff] %v2659
                  %v2661 = vld [vmem:[%s2641 + $0x48] sm:$0xff]
                  %2662 = vst [vmem:[%s2642 + $0x48] sm:$0xff] %v2661
                  %v2663 = vld [vmem:[%s2641 + $0x50] sm:$0xff]
                  %2664 = vst [vmem:[%s2642 + $0x50] sm:$0xff] %v2663
                  %v2665 = vld [vmem:[%s2641 + $0x58] sm:$0xff]
                  %2666 = vst [vmem:[%s2642 + $0x58] sm:$0xff] %v2665
                  %v2667 = vld [vmem:[%s2641 + $0x60] sm:$0xff]
                  %2668 = vst [vmem:[%s2642 + $0x60] sm:$0xff] %v2667
                  %v2669 = vld [vmem:[%s2641 + $0x68] sm:$0xff]
                  %2670 = vst [vmem:[%s2642 + $0x68] sm:$0xff] %v2669
                  %v2671 = vld [vmem:[%s2641 + $0x70] sm:$0xff]
                  %2672 = vst [vmem:[%s2642 + $0x70] sm:$0xff] %v2671
                  %v2673 = vld [vmem:[%s2641 + $0x78] sm:$0xff]
                  %2674 = vst [vmem:[%s2642 + $0x78] sm:$0xff] %v2673
                  %v2675 = vld [vmem:[%s2641 + $0x80] sm:$0xff]
                  %2676 = vst [vmem:[%s2642 + $0x200] sm:$0xff] %v2675
                  %v2677 = vld [vmem:[%s2641 + $0x88] sm:$0xff]
                  %2678 = vst [vmem:[%s2642 + $0x208] sm:$0xff] %v2677
                  %v2679 = vld [vmem:[%s2641 + $0x90] sm:$0xff]
                  %2680 = vst [vmem:[%s2642 + $0x210] sm:$0xff] %v2679
                  %v2681 = vld [vmem:[%s2641 + $0x98] sm:$0xff]
                  %2682 = vst [vmem:[%s2642 + $0x218] sm:$0xff] %v2681
                  %v2683 = vld [vmem:[%s2641 + $0xa0] sm:$0xff]
                  %2684 = vst [vmem:[%s2642 + $0x220] sm:$0xff] %v2683
                  %v2685 = vld [vmem:[%s2641 + $0xa8] sm:$0xff]
                  %2686 = vst [vmem:[%s2642 + $0x228] sm:$0xff] %v2685
                  %v2687 = vld [vmem:[%s2641 + $0xb0] sm:$0xff]
                  %2688 = vst [vmem:[%s2642 + $0x230] sm:$0xff] %v2687
                  %v2689 = vld [vmem:[%s2641 + $0xb8] sm:$0xff]
                  %2690 = vst [vmem:[%s2642 + $0x238] sm:$0xff] %v2689
                  %v2691 = vld [vmem:[%s2641 + $0xc0] sm:$0xff]
                  %2692 = vst [vmem:[%s2642 + $0x240] sm:$0xff] %v2691
                  %v2693 = vld [vmem:[%s2641 + $0xc8] sm:$0xff]
                  %2694 = vst [vmem:[%s2642 + $0x248] sm:$0xff] %v2693
                  %v2695 = vld [vmem:[%s2641 + $0xd0] sm:$0xff]
                  %2696 = vst [vmem:[%s2642 + $0x250] sm:$0xff] %v2695
                  %v2697 = vld [vmem:[%s2641 + $0xd8] sm:$0xff]
                  %2698 = vst [vmem:[%s2642 + $0x258] sm:$0xff] %v2697
                  %v2699 = vld [vmem:[%s2641 + $0xe0] sm:$0xff]
                  %2700 = vst [vmem:[%s2642 + $0x260] sm:$0xff] %v2699
                  %v2701 = vld [vmem:[%s2641 + $0xe8] sm:$0xff]
                  %2702 = vst [vmem:[%s2642 + $0x268] sm:$0xff] %v2701
                  %v2703 = vld [vmem:[%s2641 + $0xf0] sm:$0xff]
                  %2704 = vst [vmem:[%s2642 + $0x270] sm:$0xff] %v2703
                  %v2705 = vld [vmem:[%s2641 + $0xf8] sm:$0xff]
                  %2706 = vst [vmem:[%s2642 + $0x278] sm:$0xff] %v2705
                  %v2707 = vld [vmem:[%s2641 + $0x100] sm:$0xff]
                  %2708 = vst [vmem:[%s2642 + $0x400] sm:$0xff] %v2707
                  %v2709 = vld [vmem:[%s2641 + $0x108] sm:$0xff]
                  %2710 = vst [vmem:[%s2642 + $0x408] sm:$0xff] %v2709
                  %v2711 = vld [vmem:[%s2641 + $0x110] sm:$0xff]
                  %2712 = vst [vmem:[%s2642 + $0x410] sm:$0xff] %v2711
                  %v2713 = vld [vmem:[%s2641 + $0x118] sm:$0xff]
                  %2714 = vst [vmem:[%s2642 + $0x418] sm:$0xff] %v2713
                  %v2715 = vld [vmem:[%s2641 + $0x120] sm:$0xff]
                  %2716 = vst [vmem:[%s2642 + $0x420] sm:$0xff] %v2715
                  %v2717 = vld [vmem:[%s2641 + $0x128] sm:$0xff]
                  %2718 = vst [vmem:[%s2642 + $0x428] sm:$0xff] %v2717
                  %v2719 = vld [vmem:[%s2641 + $0x130] sm:$0xff]
                  %2720 = vst [vmem:[%s2642 + $0x430] sm:$0xff] %v2719
                  %v2721 = vld [vmem:[%s2641 + $0x138] sm:$0xff]
                  %2722 = vst [vmem:[%s2642 + $0x438] sm:$0xff] %v2721
                  %v2723 = vld [vmem:[%s2641 + $0x140] sm:$0xff]
                  %2724 = vst [vmem:[%s2642 + $0x440] sm:$0xff] %v2723
                  %v2725 = vld [vmem:[%s2641 + $0x148] sm:$0xff]
                  %2726 = vst [vmem:[%s2642 + $0x448] sm:$0xff] %v2725
                  %v2727 = vld [vmem:[%s2641 + $0x150] sm:$0xff]
                  %2728 = vst [vmem:[%s2642 + $0x450] sm:$0xff] %v2727
                  %v2729 = vld [vmem:[%s2641 + $0x158] sm:$0xff]
                  %2730 = vst [vmem:[%s2642 + $0x458] sm:$0xff] %v2729
                  %v2731 = vld [vmem:[%s2641 + $0x160] sm:$0xff]
                  %2732 = vst [vmem:[%s2642 + $0x460] sm:$0xff] %v2731
                  %v2733 = vld [vmem:[%s2641 + $0x168] sm:$0xff]
                  %2734 = vst [vmem:[%s2642 + $0x468] sm:$0xff] %v2733
                  %v2735 = vld [vmem:[%s2641 + $0x170] sm:$0xff]
                  %2736 = vst [vmem:[%s2642 + $0x470] sm:$0xff] %v2735
                  %v2737 = vld [vmem:[%s2641 + $0x178] sm:$0xff]
                  %2738 = vst [vmem:[%s2642 + $0x478] sm:$0xff] %v2737
                $region122: #{painn_update_3nf.1} parent=116 // loop_footer
                  %s2640 = sadd.s32 1, %s2636
                $region123: #{painn_update_3nf.1} parent=116 // loop_footer_branch
                  %2635 = sbr.rel target = $region119
                $region124: #{painn_update_3nf.1} parent=116 // loop_exit
                  _
              $region117: #{painn_update_3nf.1} parent=101 // pred_fallthru
                _
              // Predicated region
              $region125: #{painn_update_3nf.1} parent=101 // pred_check
                _
              $region126: #{painn_update_3nf.1} parent=101 // pred_check_branch
                %2740 = sbr.rel target = $region128
              $region127: #{painn_update_3nf.1} parent=101 // pred_region
                _
              $region128: #{painn_update_3nf.1} parent=101 // pred_fallthru
                _
            $region102: #{painn_update_3nf.1} parent=97 // pred_fallthru
              _
            // Predicated region
            $region103: #{painn_update_3nf.1} parent=97 // pred_check
              _
            $region104: #{painn_update_3nf.1} parent=97 // pred_check_branch
              %2526 = sbr.rel target = $region106
            $region105: #{painn_update_3nf.1} parent=97 // pred_region
              %s2528 = ssub.s32 256, 1
              loop: start=0, step=1, limit=1
              $region107: #{painn_update_3nf.1} parent=105 // loop_pre_header
                _
              $region108: #{painn_update_3nf.1} parent=105 // loop_header
                %s2530 = sphi 0, %s2534
                %p2531 = scmp.ge.s32.totalorder %s2530, 1
                %s2535 = sphi %s2510, %s2510
                %s2536 = sphi %s2520, %s2520
              $region109: #{painn_update_3nf.1} parent=105 // loop_header_branch
                %2533 = sbr.rel (%p2531) target = $region113
              $region110: #{painn_update_3nf.1} parent=105 // loop_body
                %v2537 = vld [vmem:[%s2535] sm:%s2528]
                %2538 = vst [vmem:[%s2536] sm:%s2528] %v2537
                %v2539 = vld [vmem:[%s2535 + $0x8] sm:%s2528]
                %2540 = vst [vmem:[%s2536 + $0x8] sm:%s2528] %v2539
                %v2541 = vld [vmem:[%s2535 + $0x10] sm:%s2528]
                %2542 = vst [vmem:[%s2536 + $0x10] sm:%s2528] %v2541
                %v2543 = vld [vmem:[%s2535 + $0x18] sm:%s2528]
                %2544 = vst [vmem:[%s2536 + $0x18] sm:%s2528] %v2543
                %v2545 = vld [vmem:[%s2535 + $0x20] sm:%s2528]
                %2546 = vst [vmem:[%s2536 + $0x20] sm:%s2528] %v2545
                %v2547 = vld [vmem:[%s2535 + $0x28] sm:%s2528]
                %2548 = vst [vmem:[%s2536 + $0x28] sm:%s2528] %v2547
                %v2549 = vld [vmem:[%s2535 + $0x30] sm:%s2528]
                %2550 = vst [vmem:[%s2536 + $0x30] sm:%s2528] %v2549
                %v2551 = vld [vmem:[%s2535 + $0x38] sm:%s2528]
                %2552 = vst [vmem:[%s2536 + $0x38] sm:%s2528] %v2551
                %v2553 = vld [vmem:[%s2535 + $0x40] sm:%s2528]
                %2554 = vst [vmem:[%s2536 + $0x40] sm:%s2528] %v2553
                %v2555 = vld [vmem:[%s2535 + $0x48] sm:%s2528]
                %2556 = vst [vmem:[%s2536 + $0x48] sm:%s2528] %v2555
                %v2557 = vld [vmem:[%s2535 + $0x50] sm:%s2528]
                %2558 = vst [vmem:[%s2536 + $0x50] sm:%s2528] %v2557
                %v2559 = vld [vmem:[%s2535 + $0x58] sm:%s2528]
                %2560 = vst [vmem:[%s2536 + $0x58] sm:%s2528] %v2559
                %v2561 = vld [vmem:[%s2535 + $0x60] sm:%s2528]
                %2562 = vst [vmem:[%s2536 + $0x60] sm:%s2528] %v2561
                %v2563 = vld [vmem:[%s2535 + $0x68] sm:%s2528]
                %2564 = vst [vmem:[%s2536 + $0x68] sm:%s2528] %v2563
                %v2565 = vld [vmem:[%s2535 + $0x70] sm:%s2528]
                %2566 = vst [vmem:[%s2536 + $0x70] sm:%s2528] %v2565
                %v2567 = vld [vmem:[%s2535 + $0x78] sm:%s2528]
                %2568 = vst [vmem:[%s2536 + $0x78] sm:%s2528] %v2567
                %v2569 = vld [vmem:[%s2535 + $0x80] sm:%s2528]
                %2570 = vst [vmem:[%s2536 + $0x200] sm:%s2528] %v2569
                %v2571 = vld [vmem:[%s2535 + $0x88] sm:%s2528]
                %2572 = vst [vmem:[%s2536 + $0x208] sm:%s2528] %v2571
                %v2573 = vld [vmem:[%s2535 + $0x90] sm:%s2528]
                %2574 = vst [vmem:[%s2536 + $0x210] sm:%s2528] %v2573
                %v2575 = vld [vmem:[%s2535 + $0x98] sm:%s2528]
                %2576 = vst [vmem:[%s2536 + $0x218] sm:%s2528] %v2575
                %v2577 = vld [vmem:[%s2535 + $0xa0] sm:%s2528]
                %2578 = vst [vmem:[%s2536 + $0x220] sm:%s2528] %v2577
                %v2579 = vld [vmem:[%s2535 + $0xa8] sm:%s2528]
                %2580 = vst [vmem:[%s2536 + $0x228] sm:%s2528] %v2579
                %v2581 = vld [vmem:[%s2535 + $0xb0] sm:%s2528]
                %2582 = vst [vmem:[%s2536 + $0x230] sm:%s2528] %v2581
                %v2583 = vld [vmem:[%s2535 + $0xb8] sm:%s2528]
                %2584 = vst [vmem:[%s2536 + $0x238] sm:%s2528] %v2583
                %v2585 = vld [vmem:[%s2535 + $0xc0] sm:%s2528]
                %2586 = vst [vmem:[%s2536 + $0x240] sm:%s2528] %v2585
                %v2587 = vld [vmem:[%s2535 + $0xc8] sm:%s2528]
                %2588 = vst [vmem:[%s2536 + $0x248] sm:%s2528] %v2587
                %v2589 = vld [vmem:[%s2535 + $0xd0] sm:%s2528]
                %2590 = vst [vmem:[%s2536 + $0x250] sm:%s2528] %v2589
                %v2591 = vld [vmem:[%s2535 + $0xd8] sm:%s2528]
                %2592 = vst [vmem:[%s2536 + $0x258] sm:%s2528] %v2591
                %v2593 = vld [vmem:[%s2535 + $0xe0] sm:%s2528]
                %2594 = vst [vmem:[%s2536 + $0x260] sm:%s2528] %v2593
                %v2595 = vld [vmem:[%s2535 + $0xe8] sm:%s2528]
                %2596 = vst [vmem:[%s2536 + $0x268] sm:%s2528] %v2595
                %v2597 = vld [vmem:[%s2535 + $0xf0] sm:%s2528]
                %2598 = vst [vmem:[%s2536 + $0x270] sm:%s2528] %v2597
                %v2599 = vld [vmem:[%s2535 + $0xf8] sm:%s2528]
                %2600 = vst [vmem:[%s2536 + $0x278] sm:%s2528] %v2599
                %v2601 = vld [vmem:[%s2535 + $0x100] sm:%s2528]
                %2602 = vst [vmem:[%s2536 + $0x400] sm:%s2528] %v2601
                %v2603 = vld [vmem:[%s2535 + $0x108] sm:%s2528]
                %2604 = vst [vmem:[%s2536 + $0x408] sm:%s2528] %v2603
                %v2605 = vld [vmem:[%s2535 + $0x110] sm:%s2528]
                %2606 = vst [vmem:[%s2536 + $0x410] sm:%s2528] %v2605
                %v2607 = vld [vmem:[%s2535 + $0x118] sm:%s2528]
                %2608 = vst [vmem:[%s2536 + $0x418] sm:%s2528] %v2607
                %v2609 = vld [vmem:[%s2535 + $0x120] sm:%s2528]
                %2610 = vst [vmem:[%s2536 + $0x420] sm:%s2528] %v2609
                %v2611 = vld [vmem:[%s2535 + $0x128] sm:%s2528]
                %2612 = vst [vmem:[%s2536 + $0x428] sm:%s2528] %v2611
                %v2613 = vld [vmem:[%s2535 + $0x130] sm:%s2528]
                %2614 = vst [vmem:[%s2536 + $0x430] sm:%s2528] %v2613
                %v2615 = vld [vmem:[%s2535 + $0x138] sm:%s2528]
                %2616 = vst [vmem:[%s2536 + $0x438] sm:%s2528] %v2615
                %v2617 = vld [vmem:[%s2535 + $0x140] sm:%s2528]
                %2618 = vst [vmem:[%s2536 + $0x440] sm:%s2528] %v2617
                %v2619 = vld [vmem:[%s2535 + $0x148] sm:%s2528]
                %2620 = vst [vmem:[%s2536 + $0x448] sm:%s2528] %v2619
                %v2621 = vld [vmem:[%s2535 + $0x150] sm:%s2528]
                %2622 = vst [vmem:[%s2536 + $0x450] sm:%s2528] %v2621
                %v2623 = vld [vmem:[%s2535 + $0x158] sm:%s2528]
                %2624 = vst [vmem:[%s2536 + $0x458] sm:%s2528] %v2623
                %v2625 = vld [vmem:[%s2535 + $0x160] sm:%s2528]
                %2626 = vst [vmem:[%s2536 + $0x460] sm:%s2528] %v2625
                %v2627 = vld [vmem:[%s2535 + $0x168] sm:%s2528]
                %2628 = vst [vmem:[%s2536 + $0x468] sm:%s2528] %v2627
                %v2629 = vld [vmem:[%s2535 + $0x170] sm:%s2528]
                %2630 = vst [vmem:[%s2536 + $0x470] sm:%s2528] %v2629
                %v2631 = vld [vmem:[%s2535 + $0x178] sm:%s2528]
                %2632 = vst [vmem:[%s2536 + $0x478] sm:%s2528] %v2631
              $region111: #{painn_update_3nf.1} parent=105 // loop_footer
                %s2534 = sadd.s32 1, %s2530
              $region112: #{painn_update_3nf.1} parent=105 // loop_footer_branch
                %2529 = sbr.rel target = $region108
              $region113: #{painn_update_3nf.1} parent=105 // loop_exit
                _
            $region106: #{painn_update_3nf.1} parent=97 // pred_fallthru
              _
          $region98: #{painn_update_3nf.1} parent=93 // pred_fallthru
            _
          %2741 = vnop
        $region94: #{painn_update_3nf.1} parent=81 // pred_fallthru
          _
      $region82: #{painn_update_3nf.1} parent=5 // pred_fallthru
        _
      %p2742 = scmp.le.s32.totalorder 2, %s15
      // Predicated region
      $region129: #{painn_update_3nf.1} parent=5 // pred_check
        %p2743 = pneg %p2742
      $region130: #{painn_update_3nf.1} parent=5 // pred_check_branch
        %2745 = sbr.rel (%p2743) target = $region132
      $region131: #{painn_update_3nf.1} parent=5 // pred_region
        %s2746 = ssub.s32 %s15, 2
        // Predicated region
        $region133: #{painn_update_3nf.1} parent=131 // pred_check
          %p2747 = pneg %p201
        $region134: #{painn_update_3nf.1} parent=131 // pred_check_branch
          %2749 = sbr.rel (%p2747) target = $region136
        $region135: #{painn_update_3nf.1} parent=131 // pred_region
          %s2750 = smul.u32 16, %s21
          %p2751 = scmp.lt.s32.totalorder %s2750, 63
          %s2752 = scalar_select %p2751, %s2750, 63
          %s2753 = smul.addr %s2752, 8
          %s2754 = scalar_lea.vmem %s7, %s2753
        $region136: #{painn_update_3nf.1} parent=131 // pred_fallthru
          _
        // Predicated region
        $region137: #{painn_update_3nf.1} parent=131 // pred_check
          %p2755 = pneg %p227
        $region138: #{painn_update_3nf.1} parent=131 // pred_check_branch
          %2757 = sbr.rel (%p2755) target = $region140
        $region139: #{painn_update_3nf.1} parent=131 // pred_region
          %s2758 = sand.u32 %s212, 1
          %s2759 = sand.u32 %s212, 1
          %s2760 = smul.addr %s2759, 384
          %s2761 = scalar_lea.vmem [#allocation3], %s2760
        $region140: #{painn_update_3nf.1} parent=131 // pred_fallthru
          _
      $region132: #{painn_update_3nf.1} parent=5 // pred_fallthru
        _
    $region6: #{painn_update_3nf.1} parent=1 // loop_footer
      %s19 = sadd.s32 1, %s15
    $region7: #{painn_update_3nf.1} parent=1 // loop_footer_branch
      %14 = sbr.rel target = $region3
    $region8: #{painn_update_3nf.1} parent=1 // loop_exit
      _

</llo_original>
